<compile_context>
chip_gen: v7x
topology: tpu7x:2x2x1
jax: 0.10.0
libtpu: 0.0.40
codegen_flags: <defaults>
</compile_context>

<pallas_src>
import numpy as np
import jax
import jax.numpy as jnp
from jax.experimental import pallas as pl
from jax.experimental.pallas import tpu as pltpu

# Small, forward-consistent shapes.
B, S, H, OUT = 2, 8, 32, 4          # batch, seq, hidden_size, output_dim
HC = H // 2                          # LSTM hidden per direction
G = 8 * HC                           # fused gate width: 4 gates x 2 dirs = 128
VOCAB, TYPES = 50, 2


# ----------------------------------------------------------------------------
# Pallas kernel
# Fused gate column layout (each block HC=16 lanes wide):
#   [ i_f | i_b | f_f | f_b | o_f | o_b | g_f | g_b ]
# sigmoid gates occupy lanes [0, 6*HC), tanh gates lanes [6*HC, 8*HC).
# State vectors are [h_fwd | h_bwd] / [c_fwd | c_bwd]  (B, 2*HC).
# ----------------------------------------------------------------------------
def rcnn_head_kernel(x_ref,
                     wih_ref, whh_ref, b_ref,
                     wwl_ref, wwx_ref, wb_ref,
                     fcw_ref, fcb_ref,
                     out_ref):
    x = x_ref[...]                                               # (B*S, H) batch-major

    # --- hoisted projections (off the recurrent critical path) --------------
    # input gates for every timestep, both directions, biases folded in
    gx = jnp.dot(x, wih_ref[...], preferred_element_type=jnp.float32) + b_ref[...]
    gx = gx.reshape(B, S, G)                                     # (B, S, 8*HC)
    # bert-side half of the post-LSTM projection (cat[..., H:2H] @ W + b)
    px = jnp.dot(x, wwx_ref[...], preferred_element_type=jnp.float32) + wb_ref[...]
    px = px.reshape(B, S, H)                                     # (B, S, H)

    lane = jax.lax.broadcasted_iota(jnp.int32, (1, G), 1)
    fwd_gate_mask = (lane % (2 * HC)) < HC                       # even gate blocks = fwd
    lane2 = jax.lax.broadcasted_iota(jnp.int32, (1, 2 * HC), 1)
    fwd_half_mask = lane2 < HC                                   # [h_fwd | h_bwd] split

    # Per-step fused input gates: fwd gate lanes read time s, bwd lanes read
    # time S-1-s (the two directions run interleaved in the same iteration).
    gins = [jnp.where(fwd_gate_mask, gx[:, s, :], gx[:, S - 1 - s, :])
            for s in range(S)]

    whh = whh_ref[...]                                           # (2*HC, 8*HC) block-diag
    h = jnp.zeros((B, 2 * HC), jnp.float32)                      # register-carried state
    c = jnp.zeros((B, 2 * HC), jnp.float32)
    hs = []
    for s in range(S):                                           # static unroll (S=8)
        gates = gins[s] + jnp.dot(h, whh, preferred_element_type=jnp.float32)
        sg = jax.nn.sigmoid(gates[:, :6 * HC])                   # [i_f i_b f_f f_b o_f o_b]
        gg = jnp.tanh(gates[:, 6 * HC:])                         # [g_f g_b]
        i_g = sg[:, 0:2 * HC]
        f_g = sg[:, 2 * HC:4 * HC]
        o_g = sg[:, 4 * HC:6 * HC]
        c = f_g * c + i_g * gg
        h = o_g * jnp.tanh(c)
        hs.append(h)                                             # fwd@t=s, bwd@t=S-1-s

    # cat([lstm_out, bert_out], -1) @ W + b -> tanh -> max over seq (fused
    # per-timestep with a running max; no LSTM-output scratch needed).
    wwl = wwl_ref[...]                                           # (2*HC, H)
    pooled = None
    for t in range(S):
        cat_t = jnp.where(fwd_half_mask, hs[t], hs[S - 1 - t])   # (B, 2*HC) at time t
        z_t = jnp.tanh(jnp.dot(cat_t, wwl, preferred_element_type=jnp.float32)
                       + px[:, t, :])                            # (B, H)
        pooled = z_t if pooled is None else jnp.maximum(pooled, z_t)

    out_ref[...] = (jnp.dot(pooled, fcw_ref[...], preferred_element_type=jnp.float32)
                    + fcb_ref[...])                              # (B, OUT)


# ----------------------------------------------------------------------------
# Host-side weight packing into the fused layouts the kernel expects
# ----------------------------------------------------------------------------
def pack_params(p):
    def gcol(w, g):  # gate-g columns of a torch-ordered [i, f, g, o] matrix
        return w[:, g * HC:(g + 1) * HC]

    # fused block order [i_f, i_b, f_f, f_b, o_f, o_b, g_f, g_b]  (torch g-index)
    gate_order = (0, 1, 3, 2)        # i, f, o, g

    wih_blocks, b_blocks, whh_f_row, whh_b_row = [], [], [], []
    z = jnp.zeros((HC, HC), jnp.float32)
    for g in gate_order:
        wih_blocks += [gcol(p["wih_f"], g), gcol(p["wih_b"], g)]
        b_blocks += [gcol(p["b_f"], g), gcol(p["b_b"], g)]
        whh_f_row += [gcol(p["whh_f"], g), z]
        whh_b_row += [z, gcol(p["whh_b"], g)]

    return {
        "wih_all": jnp.concatenate(wih_blocks, axis=1),                      # (H, 8*HC)
        "b_all": jnp.concatenate(b_blocks, axis=1),                          # (1, 8*HC)
        "whh_blk": jnp.concatenate(
            [jnp.concatenate(whh_f_row, axis=1),
             jnp.concatenate(whh_b_row, axis=1)], axis=0),                   # (2*HC, 8*HC)
        "ww_lstm": p["w_w"][:H, :],                                          # (2*HC, H)
        "ww_x": p["w_w"][H:, :],                                             # (H, H)
    }


def rcnn_head(bert_out, p):
    # batch-major flat slab; no host transpose needed.
    x = bert_out.reshape(B * S, H).astype(jnp.float32)
    packed = pack_params(p)
    ins = (x,
           packed["wih_all"], packed["whh_blk"], packed["b_all"],
           packed["ww_lstm"], packed["ww_x"], p["w_b"],
           p["fc_w"], p["fc_b"])
    vmem = pl.BlockSpec(memory_space=pltpu.MemorySpace.VMEM)
    return pl.pallas_call(
        rcnn_head_kernel,
        out_shape=jax.ShapeDtypeStruct((B, OUT), jnp.float32),
        in_specs=[vmem] * len(ins),
        out_specs=vmem,
    )(*ins)


# ----------------------------------------------------------------------------
# Deterministic parameters and BERT stand-in (glue, plain JAX)
# ----------------------------------------------------------------------------
def init_params(key):
    ks = jax.random.split(key, 13)

    def rnd(k, shape, scale=0.1):
        return (scale * jax.random.normal(k, shape)).astype(jnp.float32)

    p = {}
    # BERT stand-in embeddings
    p["word_emb"] = rnd(ks[0], (VOCAB, H))
    p["pos_emb"] = rnd(ks[1], (S, H))
    p["type_emb"] = rnd(ks[2], (TYPES, H))
    # LSTM (PyTorch gate order i,f,g,o), stored transposed for x @ W^T
    p["wih_f"] = rnd(ks[3], (H, 4 * HC))
    p["whh_f"] = rnd(ks[4], (HC, 4 * HC))
    p["b_f"] = rnd(ks[5], (1, 4 * HC))     # b_ih + b_hh folded together
    p["wih_b"] = rnd(ks[6], (H, 4 * HC))
    p["whh_b"] = rnd(ks[7], (HC, 4 * HC))
    p["b_b"] = rnd(ks[8], (1, 4 * HC))
    # W: Linear(2H -> H), stored transposed; fc: Linear(H -> OUT), transposed
    p["w_w"] = rnd(ks[9], (2 * H, H))
    p["w_b"] = rnd(ks[10], (1, H))
    p["fc_w"] = rnd(ks[11], (H, OUT))
    p["fc_b"] = rnd(ks[12], (1, OUT))
    return p


def bert_stub(p, input_ids, attention_mask, token_type_ids):
    # TODO(synk): the pretrained 12-layer bert-base-uncased encoder is not
    # reproduced; a deterministic embedding-sum + LayerNorm stand-in produces
    # the (B, S, H) hidden states the RCNN head consumes.  attention_mask is
    # unused because the stub has no attention for it to act on.
    del attention_mask
    h = (p["word_emb"][input_ids]
         + p["pos_emb"][None, :, :]
         + p["type_emb"][token_type_ids])
    mu = h.mean(-1, keepdims=True)
    var = ((h - mu) ** 2).mean(-1, keepdims=True)
    return (h - mu) * jax.lax.rsqrt(var + 1e-12)


# ----------------------------------------------------------------------------
# Pure-JAX reference of the head (for correctness check only)
# ----------------------------------------------------------------------------
def rcnn_head_ref(bert_out, p):
    def lstm_dir(x, wih, whh, b, reverse):
        s_len = x.shape[1]
        order = range(s_len - 1, -1, -1) if reverse else range(s_len)
        h = jnp.zeros((x.shape[0], HC), jnp.float32)
        c = jnp.zeros_like(h)
        outs = [None] * s_len
        for t in order:
            gates = x[:, t] @ wih + h @ whh + b
            i_g = jax.nn.sigmoid(gates[:, :HC])
            f_g = jax.nn.sigmoid(gates[:, HC:2 * HC])
            g_g = jnp.tanh(gates[:, 2 * HC:3 * HC])
            o_g = jax.nn.sigmoid(gates[:, 3 * HC:])
            c = f_g * c + i_g * g_g
            h = o_g * jnp.tanh(c)
            outs[t] = h
        return jnp.stack(outs, axis=1)                       # (B, S, HC)

    fwd = lstm_dir(bert_out, p["wih_f"], p["whh_f"], p["b_f"], False)
    bwd = lstm_dir(bert_out, p["wih_b"], p["whh_b"], p["b_b"], True)
    lstm_out = jnp.concatenate([fwd, bwd], axis=-1)          # (B, S, H)
    cat = jnp.concatenate([lstm_out, bert_out], axis=-1)     # (B, S, 2H)
    z = jnp.tanh(cat @ p["w_w"] + p["w_b"])                  # (B, S, H)
    pooled = jnp.max(z, axis=1)                              # (B, H)
    return pooled @ p["fc_w"] + p["fc_b"]                    # (B, OUT)


if __name__ == "__main__":
    key = jax.random.PRNGKey(0)
    pkey, ikey, tkey = jax.random.split(key, 3)
    params = init_params(pkey)

    input_ids = jax.random.randint(ikey, (B, S), 0, VOCAB)
    token_type_ids = jax.random.randint(tkey, (B, S), 0, TYPES)
    attention_mask = jnp.ones((B, S), jnp.int32)

    bert_out = bert_stub(params, input_ids, attention_mask, token_type_ids)  # (B, S, H)
    logits = rcnn_head(bert_out, params)
    logits = jax.block_until_ready(logits)

    ref = rcnn_head_ref(bert_out, params)
    if not np.allclose(np.asarray(logits), np.asarray(ref), atol=5e-3, rtol=5e-3):
        raise SystemExit("mismatch vs reference")
    print("KERNEL_OK")
</pallas_src>

<mosaic_0001>
module attributes {stable_mosaic.version = 11 : i64} {
  func.func @rcnn_head_kernel(%arg0: memref<16x32xf32, #tpu.memory_space<vmem>>, %arg1: memref<32x128xf32, #tpu.memory_space<vmem>>, %arg2: memref<32x128xf32, #tpu.memory_space<vmem>>, %arg3: memref<1x128xf32, #tpu.memory_space<vmem>>, %arg4: memref<32x32xf32, #tpu.memory_space<vmem>>, %arg5: memref<32x32xf32, #tpu.memory_space<vmem>>, %arg6: memref<1x32xf32, #tpu.memory_space<vmem>>, %arg7: memref<32x4xf32, #tpu.memory_space<vmem>>, %arg8: memref<1x4xf32, #tpu.memory_space<vmem>>, %arg9: memref<2x4xf32, #tpu.memory_space<vmem>>) attributes {dimension_semantics = [], scalar_prefetch = 0 : i64, scratch_operands = 0 : i64, tpu.core_type = #tpu.core_type<tc>} {
    %c0 = arith.constant 0 : index
    %c0_0 = arith.constant 0 : index
    %0 = vector.load %arg0[%c0, %c0_0] : memref<16x32xf32, #tpu.memory_space<vmem>>, vector<16x32xf32>
    %c0_1 = arith.constant 0 : index
    %c0_2 = arith.constant 0 : index
    %1 = vector.load %arg1[%c0_1, %c0_2] : memref<32x128xf32, #tpu.memory_space<vmem>>, vector<32x128xf32>
    %cst = arith.constant dense<0.000000e+00> : vector<16x128xf32>
    %2 = tpu.matmul %0, %1, %cst {dimension_numbers = #tpu.dot_dimension_numbers<[1], [0], [0], [1], [0, 0, 1, 1], [], []>} : vector<16x32xf32>, vector<32x128xf32>, vector<16x128xf32> -> vector<16x128xf32>
    %c0_3 = arith.constant 0 : index
    %c0_4 = arith.constant 0 : index
    %3 = vector.load %arg3[%c0_3, %c0_4] : memref<1x128xf32, #tpu.memory_space<vmem>>, vector<1x128xf32>
    %4 = vector.broadcast %3 : vector<1x128xf32> to vector<16x128xf32>
    %5 = arith.addf %2, %4 : vector<16x128xf32>
    %6 = vector.shape_cast %5 : vector<16x128xf32> to vector<2x8x128xf32>
    %c0_5 = arith.constant 0 : index
    %c0_6 = arith.constant 0 : index
    %7 = vector.load %arg5[%c0_5, %c0_6] : memref<32x32xf32, #tpu.memory_space<vmem>>, vector<32x32xf32>
    %cst_7 = arith.constant dense<0.000000e+00> : vector<16x32xf32>
    %8 = tpu.matmul %0, %7, %cst_7 {dimension_numbers = #tpu.dot_dimension_numbers<[1], [0], [0], [1], [0, 0, 1, 1], [], []>} : vector<16x32xf32>, vector<32x32xf32>, vector<16x32xf32> -> vector<16x32xf32>
    %c0_8 = arith.constant 0 : index
    %c0_9 = arith.constant 0 : index
    %9 = vector.load %arg6[%c0_8, %c0_9] : memref<1x32xf32, #tpu.memory_space<vmem>>, vector<1x32xf32>
    %10 = vector.broadcast %9 : vector<1x32xf32> to vector<16x32xf32>
    %11 = arith.addf %8, %10 : vector<16x32xf32>
    %12 = vector.shape_cast %11 : vector<16x32xf32> to vector<2x8x32xf32>
    %13 = tpu.iota {dimensions = array<i32: 1>} : vector<1x128xi32>
    %c32_i32 = arith.constant 32 : i32
    %c0_i32 = arith.constant 0 : i32
    %14 = arith.cmpi eq, %c32_i32, %c0_i32 : i32
    %c1_i32 = arith.constant 1 : i32
    %15 = arith.select %14, %c1_i32, %c32_i32 : i32
    %16 = vector.broadcast %15 : i32 to vector<1x128xi32>
    %17 = arith.remsi %13, %16 : vector<1x128xi32>
    %c0_i32_10 = arith.constant 0 : i32
    %18 = vector.broadcast %c0_i32_10 : i32 to vector<1x128xi32>
    %19 = arith.cmpi ne, %17, %18 : vector<1x128xi32>
    %c0_i32_11 = arith.constant 0 : i32
    %20 = vector.broadcast %c0_i32_11 : i32 to vector<1x128xi32>
    %21 = arith.cmpi slt, %17, %20 : vector<1x128xi32>
    %c0_i32_12 = arith.constant 0 : i32
    %22 = arith.cmpi slt, %15, %c0_i32_12 : i32
    %23 = vector.broadcast %22 : i1 to vector<1x128xi1>
    %24 = vector.broadcast %23 : vector<1x128xi1> to vector<1x128xi1>
    %25 = arith.xori %21, %24 : vector<1x128xi1>
    %26 = arith.andi %25, %19 : vector<1x128xi1>
    %27 = vector.broadcast %15 : i32 to vector<1x128xi32>
    %28 = arith.addi %17, %27 : vector<1x128xi32>
    %29 = arith.select %26, %28, %17 : vector<1x128xi1>, vector<1x128xi32>
    %c16_i32 = arith.constant 16 : i32
    %30 = vector.broadcast %c16_i32 : i32 to vector<1x128xi32>
    %31 = arith.cmpi slt, %29, %30 : vector<1x128xi32>
    %32 = tpu.iota {dimensions = array<i32: 1>} : vector<1x32xi32>
    %c16_i32_13 = arith.constant 16 : i32
    %33 = vector.broadcast %c16_i32_13 : i32 to vector<1x32xi32>
    %34 = arith.cmpi slt, %32, %33 : vector<1x32xi32>
    %35 = vector.extract_strided_slice %6 {offsets = [0, 0, 0], sizes = [2, 1, 128], strides = [1, 1, 1]} : vector<2x8x128xf32> to vector<2x1x128xf32>
    %36 = vector.shape_cast %35 : vector<2x1x128xf32> to vector<2x128xf32>
    %37 = vector.extract_strided_slice %6 {offsets = [0, 7, 0], sizes = [2, 1, 128], strides = [1, 1, 1]} : vector<2x8x128xf32> to vector<2x1x128xf32>
    %38 = vector.shape_cast %37 : vector<2x1x128xf32> to vector<2x128xf32>
    %39 = vector.shape_cast %31 : vector<1x128xi1> to vector<1x128xi1>
    %40 = vector.broadcast %39 : vector<1x128xi1> to vector<2x128xi1>
    %41 = arith.select %40, %36, %38 : vector<2x128xi1>, vector<2x128xf32>
    %42 = vector.extract_strided_slice %6 {offsets = [0, 1, 0], sizes = [2, 1, 128], strides = [1, 1, 1]} : vector<2x8x128xf32> to vector<2x1x128xf32>
    %43 = vector.shape_cast %42 : vector<2x1x128xf32> to vector<2x128xf32>
    %44 = vector.extract_strided_slice %6 {offsets = [0, 6, 0], sizes = [2, 1, 128], strides = [1, 1, 1]} : vector<2x8x128xf32> to vector<2x1x128xf32>
    %45 = vector.shape_cast %44 : vector<2x1x128xf32> to vector<2x128xf32>
    %46 = vector.shape_cast %31 : vector<1x128xi1> to vector<1x128xi1>
    %47 = vector.broadcast %46 : vector<1x128xi1> to vector<2x128xi1>
    %48 = arith.select %47, %43, %45 : vector<2x128xi1>, vector<2x128xf32>
    %49 = vector.extract_strided_slice %6 {offsets = [0, 2, 0], sizes = [2, 1, 128], strides = [1, 1, 1]} : vector<2x8x128xf32> to vector<2x1x128xf32>
    %50 = vector.shape_cast %49 : vector<2x1x128xf32> to vector<2x128xf32>
    %51 = vector.extract_strided_slice %6 {offsets = [0, 5, 0], sizes = [2, 1, 128], strides = [1, 1, 1]} : vector<2x8x128xf32> to vector<2x1x128xf32>
    %52 = vector.shape_cast %51 : vector<2x1x128xf32> to vector<2x128xf32>
    %53 = vector.shape_cast %31 : vector<1x128xi1> to vector<1x128xi1>
    %54 = vector.broadcast %53 : vector<1x128xi1> to vector<2x128xi1>
    %55 = arith.select %54, %50, %52 : vector<2x128xi1>, vector<2x128xf32>
    %56 = vector.extract_strided_slice %6 {offsets = [0, 3, 0], sizes = [2, 1, 128], strides = [1, 1, 1]} : vector<2x8x128xf32> to vector<2x1x128xf32>
    %57 = vector.shape_cast %56 : vector<2x1x128xf32> to vector<2x128xf32>
    %58 = vector.extract_strided_slice %6 {offsets = [0, 4, 0], sizes = [2, 1, 128], strides = [1, 1, 1]} : vector<2x8x128xf32> to vector<2x1x128xf32>
    %59 = vector.shape_cast %58 : vector<2x1x128xf32> to vector<2x128xf32>
    %60 = vector.shape_cast %31 : vector<1x128xi1> to vector<1x128xi1>
    %61 = vector.broadcast %60 : vector<1x128xi1> to vector<2x128xi1>
    %62 = arith.select %61, %57, %59 : vector<2x128xi1>, vector<2x128xf32>
    %63 = vector.extract_strided_slice %6 {offsets = [0, 4, 0], sizes = [2, 1, 128], strides = [1, 1, 1]} : vector<2x8x128xf32> to vector<2x1x128xf32>
    %64 = vector.shape_cast %63 : vector<2x1x128xf32> to vector<2x128xf32>
    %65 = vector.extract_strided_slice %6 {offsets = [0, 3, 0], sizes = [2, 1, 128], strides = [1, 1, 1]} : vector<2x8x128xf32> to vector<2x1x128xf32>
    %66 = vector.shape_cast %65 : vector<2x1x128xf32> to vector<2x128xf32>
    %67 = vector.shape_cast %31 : vector<1x128xi1> to vector<1x128xi1>
    %68 = vector.broadcast %67 : vector<1x128xi1> to vector<2x128xi1>
    %69 = arith.select %68, %64, %66 : vector<2x128xi1>, vector<2x128xf32>
    %70 = vector.extract_strided_slice %6 {offsets = [0, 5, 0], sizes = [2, 1, 128], strides = [1, 1, 1]} : vector<2x8x128xf32> to vector<2x1x128xf32>
    %71 = vector.shape_cast %70 : vector<2x1x128xf32> to vector<2x128xf32>
    %72 = vector.extract_strided_slice %6 {offsets = [0, 2, 0], sizes = [2, 1, 128], strides = [1, 1, 1]} : vector<2x8x128xf32> to vector<2x1x128xf32>
    %73 = vector.shape_cast %72 : vector<2x1x128xf32> to vector<2x128xf32>
    %74 = vector.shape_cast %31 : vector<1x128xi1> to vector<1x128xi1>
    %75 = vector.broadcast %74 : vector<1x128xi1> to vector<2x128xi1>
    %76 = arith.select %75, %71, %73 : vector<2x128xi1>, vector<2x128xf32>
    %77 = vector.extract_strided_slice %6 {offsets = [0, 6, 0], sizes = [2, 1, 128], strides = [1, 1, 1]} : vector<2x8x128xf32> to vector<2x1x128xf32>
    %78 = vector.shape_cast %77 : vector<2x1x128xf32> to vector<2x128xf32>
    %79 = vector.extract_strided_slice %6 {offsets = [0, 1, 0], sizes = [2, 1, 128], strides = [1, 1, 1]} : vector<2x8x128xf32> to vector<2x1x128xf32>
    %80 = vector.shape_cast %79 : vector<2x1x128xf32> to vector<2x128xf32>
    %81 = vector.shape_cast %31 : vector<1x128xi1> to vector<1x128xi1>
    %82 = vector.broadcast %81 : vector<1x128xi1> to vector<2x128xi1>
    %83 = arith.select %82, %78, %80 : vector<2x128xi1>, vector<2x128xf32>
    %84 = vector.extract_strided_slice %6 {offsets = [0, 7, 0], sizes = [2, 1, 128], strides = [1, 1, 1]} : vector<2x8x128xf32> to vector<2x1x128xf32>
    %85 = vector.shape_cast %84 : vector<2x1x128xf32> to vector<2x128xf32>
    %86 = vector.extract_strided_slice %6 {offsets = [0, 0, 0], sizes = [2, 1, 128], strides = [1, 1, 1]} : vector<2x8x128xf32> to vector<2x1x128xf32>
    %87 = vector.shape_cast %86 : vector<2x1x128xf32> to vector<2x128xf32>
    %88 = vector.shape_cast %31 : vector<1x128xi1> to vector<1x128xi1>
    %89 = vector.broadcast %88 : vector<1x128xi1> to vector<2x128xi1>
    %90 = arith.select %89, %85, %87 : vector<2x128xi1>, vector<2x128xf32>
    %c0_14 = arith.constant 0 : index
    %c0_15 = arith.constant 0 : index
    %91 = vector.load %arg2[%c0_14, %c0_15] : memref<32x128xf32, #tpu.memory_space<vmem>>, vector<32x128xf32>
    %cst_16 = arith.constant 0.000000e+00 : f32
    %92 = vector.broadcast %cst_16 : f32 to vector<2x32xf32>
    %cst_17 = arith.constant 0.000000e+00 : f32
    %93 = vector.broadcast %cst_17 : f32 to vector<2x32xf32>
    %cst_18 = arith.constant dense<0.000000e+00> : vector<2x128xf32>
    %94 = tpu.matmul %92, %91, %cst_18 {dimension_numbers = #tpu.dot_dimension_numbers<[1], [0], [0], [1], [0, 0, 1, 1], [], []>} : vector<2x32xf32>, vector<32x128xf32>, vector<2x128xf32> -> vector<2x128xf32>
    %95 = arith.addf %41, %94 : vector<2x128xf32>
    %96 = vector.extract_strided_slice %95 {offsets = [0, 0], sizes = [2, 96], strides = [1, 1]} : vector<2x128xf32> to vector<2x96xf32>
    %97 = arith.negf %96 : vector<2x96xf32>
    %98 = math.exp %97 : vector<2x96xf32>
    %cst_19 = arith.constant 1.000000e+00 : f32
    %99 = vector.broadcast %cst_19 : f32 to vector<2x96xf32>
    %100 = arith.addf %99, %98 : vector<2x96xf32>
    %101 = arith.divf %99, %100 : vector<2x96xf32>
    %102 = vector.extract_strided_slice %95 {offsets = [0, 96], sizes = [2, 32], strides = [1, 1]} : vector<2x128xf32> to vector<2x32xf32>
    %103 = math.tanh %102 : vector<2x32xf32>
    %104 = vector.extract_strided_slice %101 {offsets = [0, 0], sizes = [2, 32], strides = [1, 1]} : vector<2x96xf32> to vector<2x32xf32>
    %105 = vector.extract_strided_slice %101 {offsets = [0, 32], sizes = [2, 32], strides = [1, 1]} : vector<2x96xf32> to vector<2x32xf32>
    %106 = vector.extract_strided_slice %101 {offsets = [0, 64], sizes = [2, 32], strides = [1, 1]} : vector<2x96xf32> to vector<2x32xf32>
    %107 = arith.mulf %105, %93 : vector<2x32xf32>
    %108 = arith.mulf %104, %103 : vector<2x32xf32>
    %109 = arith.addf %107, %108 : vector<2x32xf32>
    %110 = math.tanh %109 : vector<2x32xf32>
    %111 = arith.mulf %106, %110 : vector<2x32xf32>
    %cst_20 = arith.constant dense<0.000000e+00> : vector<2x128xf32>
    %112 = tpu.matmul %111, %91, %cst_20 {dimension_numbers = #tpu.dot_dimension_numbers<[1], [0], [0], [1], [0, 0, 1, 1], [], []>} : vector<2x32xf32>, vector<32x128xf32>, vector<2x128xf32> -> vector<2x128xf32>
    %113 = arith.addf %48, %112 : vector<2x128xf32>
    %114 = vector.extract_strided_slice %113 {offsets = [0, 0], sizes = [2, 96], strides = [1, 1]} : vector<2x128xf32> to vector<2x96xf32>
    %115 = arith.negf %114 : vector<2x96xf32>
    %116 = math.exp %115 : vector<2x96xf32>
    %cst_21 = arith.constant 1.000000e+00 : f32
    %117 = vector.broadcast %cst_21 : f32 to vector<2x96xf32>
    %118 = arith.addf %117, %116 : vector<2x96xf32>
    %119 = arith.divf %117, %118 : vector<2x96xf32>
    %120 = vector.extract_strided_slice %113 {offsets = [0, 96], sizes = [2, 32], strides = [1, 1]} : vector<2x128xf32> to vector<2x32xf32>
    %121 = math.tanh %120 : vector<2x32xf32>
    %122 = vector.extract_strided_slice %119 {offsets = [0, 0], sizes = [2, 32], strides = [1, 1]} : vector<2x96xf32> to vector<2x32xf32>
    %123 = vector.extract_strided_slice %119 {offsets = [0, 32], sizes = [2, 32], strides = [1, 1]} : vector<2x96xf32> to vector<2x32xf32>
    %124 = vector.extract_strided_slice %119 {offsets = [0, 64], sizes = [2, 32], strides = [1, 1]} : vector<2x96xf32> to vector<2x32xf32>
    %125 = arith.mulf %123, %109 : vector<2x32xf32>
    %126 = arith.mulf %122, %121 : vector<2x32xf32>
    %127 = arith.addf %125, %126 : vector<2x32xf32>
    %128 = math.tanh %127 : vector<2x32xf32>
    %129 = arith.mulf %124, %128 : vector<2x32xf32>
    %cst_22 = arith.constant dense<0.000000e+00> : vector<2x128xf32>
    %130 = tpu.matmul %129, %91, %cst_22 {dimension_numbers = #tpu.dot_dimension_numbers<[1], [0], [0], [1], [0, 0, 1, 1], [], []>} : vector<2x32xf32>, vector<32x128xf32>, vector<2x128xf32> -> vector<2x128xf32>
    %131 = arith.addf %55, %130 : vector<2x128xf32>
    %132 = vector.extract_strided_slice %131 {offsets = [0, 0], sizes = [2, 96], strides = [1, 1]} : vector<2x128xf32> to vector<2x96xf32>
    %133 = arith.negf %132 : vector<2x96xf32>
    %134 = math.exp %133 : vector<2x96xf32>
    %cst_23 = arith.constant 1.000000e+00 : f32
    %135 = vector.broadcast %cst_23 : f32 to vector<2x96xf32>
    %136 = arith.addf %135, %134 : vector<2x96xf32>
    %137 = arith.divf %135, %136 : vector<2x96xf32>
    %138 = vector.extract_strided_slice %131 {offsets = [0, 96], sizes = [2, 32], strides = [1, 1]} : vector<2x128xf32> to vector<2x32xf32>
    %139 = math.tanh %138 : vector<2x32xf32>
    %140 = vector.extract_strided_slice %137 {offsets = [0, 0], sizes = [2, 32], strides = [1, 1]} : vector<2x96xf32> to vector<2x32xf32>
    %141 = vector.extract_strided_slice %137 {offsets = [0, 32], sizes = [2, 32], strides = [1, 1]} : vector<2x96xf32> to vector<2x32xf32>
    %142 = vector.extract_strided_slice %137 {offsets = [0, 64], sizes = [2, 32], strides = [1, 1]} : vector<2x96xf32> to vector<2x32xf32>
    %143 = arith.mulf %141, %127 : vector<2x32xf32>
    %144 = arith.mulf %140, %139 : vector<2x32xf32>
    %145 = arith.addf %143, %144 : vector<2x32xf32>
    %146 = math.tanh %145 : vector<2x32xf32>
    %147 = arith.mulf %142, %146 : vector<2x32xf32>
    %cst_24 = arith.constant dense<0.000000e+00> : vector<2x128xf32>
    %148 = tpu.matmul %147, %91, %cst_24 {dimension_numbers = #tpu.dot_dimension_numbers<[1], [0], [0], [1], [0, 0, 1, 1], [], []>} : vector<2x32xf32>, vector<32x128xf32>, vector<2x128xf32> -> vector<2x128xf32>
    %149 = arith.addf %62, %148 : vector<2x128xf32>
    %150 = vector.extract_strided_slice %149 {offsets = [0, 0], sizes = [2, 96], strides = [1, 1]} : vector<2x128xf32> to vector<2x96xf32>
    %151 = arith.negf %150 : vector<2x96xf32>
    %152 = math.exp %151 : vector<2x96xf32>
    %cst_25 = arith.constant 1.000000e+00 : f32
    %153 = vector.broadcast %cst_25 : f32 to vector<2x96xf32>
    %154 = arith.addf %153, %152 : vector<2x96xf32>
    %155 = arith.divf %153, %154 : vector<2x96xf32>
    %156 = vector.extract_strided_slice %149 {offsets = [0, 96], sizes = [2, 32], strides = [1, 1]} : vector<2x128xf32> to vector<2x32xf32>
    %157 = math.tanh %156 : vector<2x32xf32>
    %158 = vector.extract_strided_slice %155 {offsets = [0, 0], sizes = [2, 32], strides = [1, 1]} : vector<2x96xf32> to vector<2x32xf32>
    %159 = vector.extract_strided_slice %155 {offsets = [0, 32], sizes = [2, 32], strides = [1, 1]} : vector<2x96xf32> to vector<2x32xf32>
    %160 = vector.extract_strided_slice %155 {offsets = [0, 64], sizes = [2, 32], strides = [1, 1]} : vector<2x96xf32> to vector<2x32xf32>
    %161 = arith.mulf %159, %145 : vector<2x32xf32>
    %162 = arith.mulf %158, %157 : vector<2x32xf32>
    %163 = arith.addf %161, %162 : vector<2x32xf32>
    %164 = math.tanh %163 : vector<2x32xf32>
    %165 = arith.mulf %160, %164 : vector<2x32xf32>
    %cst_26 = arith.constant dense<0.000000e+00> : vector<2x128xf32>
    %166 = tpu.matmul %165, %91, %cst_26 {dimension_numbers = #tpu.dot_dimension_numbers<[1], [0], [0], [1], [0, 0, 1, 1], [], []>} : vector<2x32xf32>, vector<32x128xf32>, vector<2x128xf32> -> vector<2x128xf32>
    %167 = arith.addf %69, %166 : vector<2x128xf32>
    %168 = vector.extract_strided_slice %167 {offsets = [0, 0], sizes = [2, 96], strides = [1, 1]} : vector<2x128xf32> to vector<2x96xf32>
    %169 = arith.negf %168 : vector<2x96xf32>
    %170 = math.exp %169 : vector<2x96xf32>
    %cst_27 = arith.constant 1.000000e+00 : f32
    %171 = vector.broadcast %cst_27 : f32 to vector<2x96xf32>
    %172 = arith.addf %171, %170 : vector<2x96xf32>
    %173 = arith.divf %171, %172 : vector<2x96xf32>
    %174 = vector.extract_strided_slice %167 {offsets = [0, 96], sizes = [2, 32], strides = [1, 1]} : vector<2x128xf32> to vector<2x32xf32>
    %175 = math.tanh %174 : vector<2x32xf32>
    %176 = vector.extract_strided_slice %173 {offsets = [0, 0], sizes = [2, 32], strides = [1, 1]} : vector<2x96xf32> to vector<2x32xf32>
    %177 = vector.extract_strided_slice %173 {offsets = [0, 32], sizes = [2, 32], strides = [1, 1]} : vector<2x96xf32> to vector<2x32xf32>
    %178 = vector.extract_strided_slice %173 {offsets = [0, 64], sizes = [2, 32], strides = [1, 1]} : vector<2x96xf32> to vector<2x32xf32>
    %179 = arith.mulf %177, %163 : vector<2x32xf32>
    %180 = arith.mulf %176, %175 : vector<2x32xf32>
    %181 = arith.addf %179, %180 : vector<2x32xf32>
    %182 = math.tanh %181 : vector<2x32xf32>
    %183 = arith.mulf %178, %182 : vector<2x32xf32>
    %cst_28 = arith.constant dense<0.000000e+00> : vector<2x128xf32>
    %184 = tpu.matmul %183, %91, %cst_28 {dimension_numbers = #tpu.dot_dimension_numbers<[1], [0], [0], [1], [0, 0, 1, 1], [], []>} : vector<2x32xf32>, vector<32x128xf32>, vector<2x128xf32> -> vector<2x128xf32>
    %185 = arith.addf %76, %184 : vector<2x128xf32>
    %186 = vector.extract_strided_slice %185 {offsets = [0, 0], sizes = [2, 96], strides = [1, 1]} : vector<2x128xf32> to vector<2x96xf32>
    %187 = arith.negf %186 : vector<2x96xf32>
    %188 = math.exp %187 : vector<2x96xf32>
    %cst_29 = arith.constant 1.000000e+00 : f32
    %189 = vector.broadcast %cst_29 : f32 to vector<2x96xf32>
    %190 = arith.addf %189, %188 : vector<2x96xf32>
    %191 = arith.divf %189, %190 : vector<2x96xf32>
    %192 = vector.extract_strided_slice %185 {offsets = [0, 96], sizes = [2, 32], strides = [1, 1]} : vector<2x128xf32> to vector<2x32xf32>
    %193 = math.tanh %192 : vector<2x32xf32>
    %194 = vector.extract_strided_slice %191 {offsets = [0, 0], sizes = [2, 32], strides = [1, 1]} : vector<2x96xf32> to vector<2x32xf32>
    %195 = vector.extract_strided_slice %191 {offsets = [0, 32], sizes = [2, 32], strides = [1, 1]} : vector<2x96xf32> to vector<2x32xf32>
    %196 = vector.extract_strided_slice %191 {offsets = [0, 64], sizes = [2, 32], strides = [1, 1]} : vector<2x96xf32> to vector<2x32xf32>
    %197 = arith.mulf %195, %181 : vector<2x32xf32>
    %198 = arith.mulf %194, %193 : vector<2x32xf32>
    %199 = arith.addf %197, %198 : vector<2x32xf32>
    %200 = math.tanh %199 : vector<2x32xf32>
    %201 = arith.mulf %196, %200 : vector<2x32xf32>
    %cst_30 = arith.constant dense<0.000000e+00> : vector<2x128xf32>
    %202 = tpu.matmul %201, %91, %cst_30 {dimension_numbers = #tpu.dot_dimension_numbers<[1], [0], [0], [1], [0, 0, 1, 1], [], []>} : vector<2x32xf32>, vector<32x128xf32>, vector<2x128xf32> -> vector<2x128xf32>
    %203 = arith.addf %83, %202 : vector<2x128xf32>
    %204 = vector.extract_strided_slice %203 {offsets = [0, 0], sizes = [2, 96], strides = [1, 1]} : vector<2x128xf32> to vector<2x96xf32>
    %205 = arith.negf %204 : vector<2x96xf32>
    %206 = math.exp %205 : vector<2x96xf32>
    %cst_31 = arith.constant 1.000000e+00 : f32
    %207 = vector.broadcast %cst_31 : f32 to vector<2x96xf32>
    %208 = arith.addf %207, %206 : vector<2x96xf32>
    %209 = arith.divf %207, %208 : vector<2x96xf32>
    %210 = vector.extract_strided_slice %203 {offsets = [0, 96], sizes = [2, 32], strides = [1, 1]} : vector<2x128xf32> to vector<2x32xf32>
    %211 = math.tanh %210 : vector<2x32xf32>
    %212 = vector.extract_strided_slice %209 {offsets = [0, 0], sizes = [2, 32], strides = [1, 1]} : vector<2x96xf32> to vector<2x32xf32>
    %213 = vector.extract_strided_slice %209 {offsets = [0, 32], sizes = [2, 32], strides = [1, 1]} : vector<2x96xf32> to vector<2x32xf32>
    %214 = vector.extract_strided_slice %209 {offsets = [0, 64], sizes = [2, 32], strides = [1, 1]} : vector<2x96xf32> to vector<2x32xf32>
    %215 = arith.mulf %213, %199 : vector<2x32xf32>
    %216 = arith.mulf %212, %211 : vector<2x32xf32>
    %217 = arith.addf %215, %216 : vector<2x32xf32>
    %218 = math.tanh %217 : vector<2x32xf32>
    %219 = arith.mulf %214, %218 : vector<2x32xf32>
    %cst_32 = arith.constant dense<0.000000e+00> : vector<2x128xf32>
    %220 = tpu.matmul %219, %91, %cst_32 {dimension_numbers = #tpu.dot_dimension_numbers<[1], [0], [0], [1], [0, 0, 1, 1], [], []>} : vector<2x32xf32>, vector<32x128xf32>, vector<2x128xf32> -> vector<2x128xf32>
    %221 = arith.addf %90, %220 : vector<2x128xf32>
    %222 = vector.extract_strided_slice %221 {offsets = [0, 0], sizes = [2, 96], strides = [1, 1]} : vector<2x128xf32> to vector<2x96xf32>
    %223 = arith.negf %222 : vector<2x96xf32>
    %224 = math.exp %223 : vector<2x96xf32>
    %cst_33 = arith.constant 1.000000e+00 : f32
    %225 = vector.broadcast %cst_33 : f32 to vector<2x96xf32>
    %226 = arith.addf %225, %224 : vector<2x96xf32>
    %227 = arith.divf %225, %226 : vector<2x96xf32>
    %228 = vector.extract_strided_slice %221 {offsets = [0, 96], sizes = [2, 32], strides = [1, 1]} : vector<2x128xf32> to vector<2x32xf32>
    %229 = math.tanh %228 : vector<2x32xf32>
    %230 = vector.extract_strided_slice %227 {offsets = [0, 0], sizes = [2, 32], strides = [1, 1]} : vector<2x96xf32> to vector<2x32xf32>
    %231 = vector.extract_strided_slice %227 {offsets = [0, 32], sizes = [2, 32], strides = [1, 1]} : vector<2x96xf32> to vector<2x32xf32>
    %232 = vector.extract_strided_slice %227 {offsets = [0, 64], sizes = [2, 32], strides = [1, 1]} : vector<2x96xf32> to vector<2x32xf32>
    %233 = arith.mulf %231, %217 : vector<2x32xf32>
    %234 = arith.mulf %230, %229 : vector<2x32xf32>
    %235 = arith.addf %233, %234 : vector<2x32xf32>
    %236 = math.tanh %235 : vector<2x32xf32>
    %237 = arith.mulf %232, %236 : vector<2x32xf32>
    %c0_34 = arith.constant 0 : index
    %c0_35 = arith.constant 0 : index
    %238 = vector.load %arg4[%c0_34, %c0_35] : memref<32x32xf32, #tpu.memory_space<vmem>>, vector<32x32xf32>
    %239 = vector.shape_cast %34 : vector<1x32xi1> to vector<1x32xi1>
    %240 = vector.broadcast %239 : vector<1x32xi1> to vector<2x32xi1>
    %241 = arith.select %240, %111, %237 : vector<2x32xi1>, vector<2x32xf32>
    %cst_36 = arith.constant dense<0.000000e+00> : vector<2x32xf32>
    %242 = tpu.matmul %241, %238, %cst_36 {dimension_numbers = #tpu.dot_dimension_numbers<[1], [0], [0], [1], [0, 0, 1, 1], [], []>} : vector<2x32xf32>, vector<32x32xf32>, vector<2x32xf32> -> vector<2x32xf32>
    %243 = vector.extract_strided_slice %12 {offsets = [0, 0, 0], sizes = [2, 1, 32], strides = [1, 1, 1]} : vector<2x8x32xf32> to vector<2x1x32xf32>
    %244 = vector.shape_cast %243 : vector<2x1x32xf32> to vector<2x32xf32>
    %245 = arith.addf %242, %244 : vector<2x32xf32>
    %246 = math.tanh %245 : vector<2x32xf32>
    %247 = vector.shape_cast %34 : vector<1x32xi1> to vector<1x32xi1>
    %248 = vector.broadcast %247 : vector<1x32xi1> to vector<2x32xi1>
    %249 = arith.select %248, %129, %219 : vector<2x32xi1>, vector<2x32xf32>
    %cst_37 = arith.constant dense<0.000000e+00> : vector<2x32xf32>
    %250 = tpu.matmul %249, %238, %cst_37 {dimension_numbers = #tpu.dot_dimension_numbers<[1], [0], [0], [1], [0, 0, 1, 1], [], []>} : vector<2x32xf32>, vector<32x32xf32>, vector<2x32xf32> -> vector<2x32xf32>
    %251 = vector.extract_strided_slice %12 {offsets = [0, 1, 0], sizes = [2, 1, 32], strides = [1, 1, 1]} : vector<2x8x32xf32> to vector<2x1x32xf32>
    %252 = vector.shape_cast %251 : vector<2x1x32xf32> to vector<2x32xf32>
    %253 = arith.addf %250, %252 : vector<2x32xf32>
    %254 = math.tanh %253 : vector<2x32xf32>
    %255 = arith.maximumf %246, %254 : vector<2x32xf32>
    %256 = vector.shape_cast %34 : vector<1x32xi1> to vector<1x32xi1>
    %257 = vector.broadcast %256 : vector<1x32xi1> to vector<2x32xi1>
    %258 = arith.select %257, %147, %201 : vector<2x32xi1>, vector<2x32xf32>
    %cst_38 = arith.constant dense<0.000000e+00> : vector<2x32xf32>
    %259 = tpu.matmul %258, %238, %cst_38 {dimension_numbers = #tpu.dot_dimension_numbers<[1], [0], [0], [1], [0, 0, 1, 1], [], []>} : vector<2x32xf32>, vector<32x32xf32>, vector<2x32xf32> -> vector<2x32xf32>
    %260 = vector.extract_strided_slice %12 {offsets = [0, 2, 0], sizes = [2, 1, 32], strides = [1, 1, 1]} : vector<2x8x32xf32> to vector<2x1x32xf32>
    %261 = vector.shape_cast %260 : vector<2x1x32xf32> to vector<2x32xf32>
    %262 = arith.addf %259, %261 : vector<2x32xf32>
    %263 = math.tanh %262 : vector<2x32xf32>
    %264 = arith.maximumf %255, %263 : vector<2x32xf32>
    %265 = vector.shape_cast %34 : vector<1x32xi1> to vector<1x32xi1>
    %266 = vector.broadcast %265 : vector<1x32xi1> to vector<2x32xi1>
    %267 = arith.select %266, %165, %183 : vector<2x32xi1>, vector<2x32xf32>
    %cst_39 = arith.constant dense<0.000000e+00> : vector<2x32xf32>
    %268 = tpu.matmul %267, %238, %cst_39 {dimension_numbers = #tpu.dot_dimension_numbers<[1], [0], [0], [1], [0, 0, 1, 1], [], []>} : vector<2x32xf32>, vector<32x32xf32>, vector<2x32xf32> -> vector<2x32xf32>
    %269 = vector.extract_strided_slice %12 {offsets = [0, 3, 0], sizes = [2, 1, 32], strides = [1, 1, 1]} : vector<2x8x32xf32> to vector<2x1x32xf32>
    %270 = vector.shape_cast %269 : vector<2x1x32xf32> to vector<2x32xf32>
    %271 = arith.addf %268, %270 : vector<2x32xf32>
    %272 = math.tanh %271 : vector<2x32xf32>
    %273 = arith.maximumf %264, %272 : vector<2x32xf32>
    %274 = vector.shape_cast %34 : vector<1x32xi1> to vector<1x32xi1>
    %275 = vector.broadcast %274 : vector<1x32xi1> to vector<2x32xi1>
    %276 = arith.select %275, %183, %165 : vector<2x32xi1>, vector<2x32xf32>
    %cst_40 = arith.constant dense<0.000000e+00> : vector<2x32xf32>
    %277 = tpu.matmul %276, %238, %cst_40 {dimension_numbers = #tpu.dot_dimension_numbers<[1], [0], [0], [1], [0, 0, 1, 1], [], []>} : vector<2x32xf32>, vector<32x32xf32>, vector<2x32xf32> -> vector<2x32xf32>
    %278 = vector.extract_strided_slice %12 {offsets = [0, 4, 0], sizes = [2, 1, 32], strides = [1, 1, 1]} : vector<2x8x32xf32> to vector<2x1x32xf32>
    %279 = vector.shape_cast %278 : vector<2x1x32xf32> to vector<2x32xf32>
    %280 = arith.addf %277, %279 : vector<2x32xf32>
    %281 = math.tanh %280 : vector<2x32xf32>
    %282 = arith.maximumf %273, %281 : vector<2x32xf32>
    %283 = vector.shape_cast %34 : vector<1x32xi1> to vector<1x32xi1>
    %284 = vector.broadcast %283 : vector<1x32xi1> to vector<2x32xi1>
    %285 = arith.select %284, %201, %147 : vector<2x32xi1>, vector<2x32xf32>
    %cst_41 = arith.constant dense<0.000000e+00> : vector<2x32xf32>
    %286 = tpu.matmul %285, %238, %cst_41 {dimension_numbers = #tpu.dot_dimension_numbers<[1], [0], [0], [1], [0, 0, 1, 1], [], []>} : vector<2x32xf32>, vector<32x32xf32>, vector<2x32xf32> -> vector<2x32xf32>
    %287 = vector.extract_strided_slice %12 {offsets = [0, 5, 0], sizes = [2, 1, 32], strides = [1, 1, 1]} : vector<2x8x32xf32> to vector<2x1x32xf32>
    %288 = vector.shape_cast %287 : vector<2x1x32xf32> to vector<2x32xf32>
    %289 = arith.addf %286, %288 : vector<2x32xf32>
    %290 = math.tanh %289 : vector<2x32xf32>
    %291 = arith.maximumf %282, %290 : vector<2x32xf32>
    %292 = vector.shape_cast %34 : vector<1x32xi1> to vector<1x32xi1>
    %293 = vector.broadcast %292 : vector<1x32xi1> to vector<2x32xi1>
    %294 = arith.select %293, %219, %129 : vector<2x32xi1>, vector<2x32xf32>
    %cst_42 = arith.constant dense<0.000000e+00> : vector<2x32xf32>
    %295 = tpu.matmul %294, %238, %cst_42 {dimension_numbers = #tpu.dot_dimension_numbers<[1], [0], [0], [1], [0, 0, 1, 1], [], []>} : vector<2x32xf32>, vector<32x32xf32>, vector<2x32xf32> -> vector<2x32xf32>
    %296 = vector.extract_strided_slice %12 {offsets = [0, 6, 0], sizes = [2, 1, 32], strides = [1, 1, 1]} : vector<2x8x32xf32> to vector<2x1x32xf32>
    %297 = vector.shape_cast %296 : vector<2x1x32xf32> to vector<2x32xf32>
    %298 = arith.addf %295, %297 : vector<2x32xf32>
    %299 = math.tanh %298 : vector<2x32xf32>
    %300 = arith.maximumf %291, %299 : vector<2x32xf32>
    %301 = vector.shape_cast %34 : vector<1x32xi1> to vector<1x32xi1>
    %302 = vector.broadcast %301 : vector<1x32xi1> to vector<2x32xi1>
    %303 = arith.select %302, %237, %111 : vector<2x32xi1>, vector<2x32xf32>
    %cst_43 = arith.constant dense<0.000000e+00> : vector<2x32xf32>
    %304 = tpu.matmul %303, %238, %cst_43 {dimension_numbers = #tpu.dot_dimension_numbers<[1], [0], [0], [1], [0, 0, 1, 1], [], []>} : vector<2x32xf32>, vector<32x32xf32>, vector<2x32xf32> -> vector<2x32xf32>
    %305 = vector.extract_strided_slice %12 {offsets = [0, 7, 0], sizes = [2, 1, 32], strides = [1, 1, 1]} : vector<2x8x32xf32> to vector<2x1x32xf32>
    %306 = vector.shape_cast %305 : vector<2x1x32xf32> to vector<2x32xf32>
    %307 = arith.addf %304, %306 : vector<2x32xf32>
    %308 = math.tanh %307 : vector<2x32xf32>
    %309 = arith.maximumf %300, %308 : vector<2x32xf32>
    %c0_44 = arith.constant 0 : index
    %c0_45 = arith.constant 0 : index
    %310 = vector.load %arg7[%c0_44, %c0_45] : memref<32x4xf32, #tpu.memory_space<vmem>>, vector<32x4xf32>
    %cst_46 = arith.constant dense<0.000000e+00> : vector<2x4xf32>
    %311 = tpu.matmul %309, %310, %cst_46 {dimension_numbers = #tpu.dot_dimension_numbers<[1], [0], [0], [1], [0, 0, 1, 1], [], []>} : vector<2x32xf32>, vector<32x4xf32>, vector<2x4xf32> -> vector<2x4xf32>
    %c0_47 = arith.constant 0 : index
    %c0_48 = arith.constant 0 : index
    %312 = vector.load %arg8[%c0_47, %c0_48] : memref<1x4xf32, #tpu.memory_space<vmem>>, vector<1x4xf32>
    %313 = vector.broadcast %312 : vector<1x4xf32> to vector<2x4xf32>
    %314 = arith.addf %311, %313 : vector<2x4xf32>
    %c0_49 = arith.constant 0 : index
    %c0_50 = arith.constant 0 : index
    %315 = vector.load %arg9[%c0_49, %c0_50] : memref<2x4xf32, #tpu.memory_space<vmem>>, vector<2x4xf32>
    tpu.vector_store %arg9[%c0_49, %c0_50], %314 {strides = array<i32>} : memref<2x4xf32, #tpu.memory_space<vmem>>, vector<2x4xf32>,
    return
  }
}

</mosaic_0001>

<llo_original>
// kernel: tpu_custom_call.1
$region0: #{tpu_custom_call.1}
  #allocation0 [shape = 'u32[]', space=smem, size = 0x4, offset = 0x4, fixed_abs, tag = 'smem constant byte address 0x4 - core index']
  #allocation1 [shape = 'u32[144,128]{1,0:T(1,128)}', space=vmem, size = 0x12000, scoped, tag = 'internal scratch']
  %s0 = inlined_call_operand.hbm [shape: f32[16,32], index: 0, kind: input, shape index: {}]
  %s1 = inlined_call_operand.vmem [shape: f32[32,128], index: 1, kind: input, shape index: {}]
  %s2 = inlined_call_operand.hbm [shape: f32[32,128], index: 2, kind: input, shape index: {}]
  %s3 = inlined_call_operand.vmem [shape: f32[1,128], index: 3, kind: input, shape index: {}]
  %s4 = inlined_call_operand.hbm [shape: f32[32,32], index: 4, kind: input, shape index: {}]
  %s5 = inlined_call_operand.hbm [shape: f32[32,32], index: 5, kind: input, shape index: {}]
  %s6 = inlined_call_operand.vmem [shape: f32[1,32], index: 6, kind: input, shape index: {}]
  %s7 = inlined_call_operand.vmem [shape: f32[32,4], index: 7, kind: input, shape index: {}]
  %s8 = inlined_call_operand.vmem [shape: f32[1,4], index: 8, kind: input, shape index: {}]
  %s9 = inlined_call_operand.hbm [shape: f32[2,4], index: 9, kind: output, shape index: {}]
  %s10 = sld [smem:[#allocation0]]
  $region62: #{tpu_custom_call.1} parent=0
    _
  %s12 = ssub.s32 1, %s10
  %s13 = scalar_select 0, %s12, %s10
  $region1: #{tpu_custom_call.1} parent=0
    #allocation2 [shape = 'u8[8192]{0}', space=vmem, size = 0x2000, scoped, tag = 'input window, operand 0, single buffered']
    #allocation3 [shape = 's32[1]{0}', space=sflag, size = 0x4, scoped, tag = 'scoped memory for tpu_custom_call.1']
    #allocation4 [shape = 's32[1]{0}', space=sflag, size = 0x4, scoped, tag = 'scoped memory for tpu_custom_call.1']
    #allocation5 [shape = 'u8[16384]{0}', space=vmem, size = 0x4000, scoped, tag = 'input window, operand 2, single buffered']
    #allocation6 [shape = 's32[1]{0}', space=sflag, size = 0x4, scoped, tag = 'scoped memory for tpu_custom_call.1']
    #allocation7 [shape = 'u8[16384]{0}', space=vmem, size = 0x4000, scoped, tag = 'input window, operand 4, single buffered']
    #allocation8 [shape = 'u8[16384]{0}', space=vmem, size = 0x4000, scoped, tag = 'input window, operand 5, single buffered']
    #allocation9 [shape = 's32[1]{0}', space=sflag, size = 0x4, scoped, tag = 'scoped memory for tpu_custom_call.1']
    #allocation10 [shape = 'u8[1024]{0}', space=vmem, size = 0x400, scoped, tag = 'output window, operand 0, single buffered']
    %14 = vsyncpa [#allocation3], 0
    %15 = vsyncpa [#allocation6], 0
    %16 = vsyncpa [#allocation9], 0
    %17 = vsyncpa [#allocation4], 0
    // Predicated region
    $region2: #{tpu_custom_call.1} parent=1 // pred_check
      _
    $region3: #{tpu_custom_call.1} parent=1 // pred_check_branch
      %19 = sbr.rel (0) target = $region5
    $region4: #{tpu_custom_call.1} parent=1 // pred_region
      %s21 = ssub.s32 256, 256
      %22 = vsyncadd [#allocation3], %s21
      %s23 = sshll.u32 [#allocation2], 4
      %s24 = int_to_ptr.vmem [resolvable:$true] %s23
      %29 = dma.hbm_to_vmem [thread:$0]  %s0, 256, %s24, [#allocation3], 128, 128, 8
    $region5: #{tpu_custom_call.1} parent=1 // pred_fallthru
      _
    // Predicated region
    $region6: #{tpu_custom_call.1} parent=1 // pred_check
      _
    $region7: #{tpu_custom_call.1} parent=1 // pred_check_branch
      %31 = sbr.rel (0) target = $region9
    $region8: #{tpu_custom_call.1} parent=1 // pred_region
      _
    $region9: #{tpu_custom_call.1} parent=1 // pred_fallthru
      _
    // Predicated region
    $region10: #{tpu_custom_call.1} parent=1 // pred_check
      _
    $region11: #{tpu_custom_call.1} parent=1 // pred_check_branch
      %33 = sbr.rel (0) target = $region13
    $region12: #{tpu_custom_call.1} parent=1 // pred_region
      %s35 = ssub.s32 512, 512
      %36 = vsyncadd [#allocation6], %s35
      %s37 = sshll.u32 [#allocation5], 4
      %s38 = int_to_ptr.vmem [resolvable:$true] %s37
      %43 = dma.hbm_to_vmem [thread:$0]  %s2, 512, %s38, [#allocation6], 128, 128, 8
    $region13: #{tpu_custom_call.1} parent=1 // pred_fallthru
      _
    // Predicated region
    $region14: #{tpu_custom_call.1} parent=1 // pred_check
      _
    $region15: #{tpu_custom_call.1} parent=1 // pred_check_branch
      %45 = sbr.rel (0) target = $region17
    $region16: #{tpu_custom_call.1} parent=1 // pred_region
      _
    $region17: #{tpu_custom_call.1} parent=1 // pred_fallthru
      _
    // Predicated region
    $region18: #{tpu_custom_call.1} parent=1 // pred_check
      _
    $region19: #{tpu_custom_call.1} parent=1 // pred_check_branch
      %47 = sbr.rel (0) target = $region21
    $region20: #{tpu_custom_call.1} parent=1 // pred_region
      %s49 = ssub.s32 512, 512
      %50 = vsyncadd [#allocation6], %s49
      %s51 = sshll.u32 [#allocation7], 4
      %s52 = int_to_ptr.vmem [resolvable:$true] %s51
      %57 = dma.hbm_to_vmem [thread:$0]  %s4, 512, %s52, [#allocation6], 128, 128, 8
    $region21: #{tpu_custom_call.1} parent=1 // pred_fallthru
      _
    // Predicated region
    $region22: #{tpu_custom_call.1} parent=1 // pred_check
      _
    $region23: #{tpu_custom_call.1} parent=1 // pred_check_branch
      %59 = sbr.rel (0) target = $region25
    $region24: #{tpu_custom_call.1} parent=1 // pred_region
      %s61 = ssub.s32 512, 512
      %62 = vsyncadd [#allocation9], %s61
      %s63 = sshll.u32 [#allocation8], 4
      %s64 = int_to_ptr.vmem [resolvable:$true] %s63
      %69 = dma.hbm_to_vmem [thread:$0]  %s5, 512, %s64, [#allocation9], 128, 128, 8
    $region25: #{tpu_custom_call.1} parent=1 // pred_fallthru
      _
    // Predicated region
    $region26: #{tpu_custom_call.1} parent=1 // pred_check
      _
    $region27: #{tpu_custom_call.1} parent=1 // pred_check_branch
      %71 = sbr.rel (0) target = $region29
    $region28: #{tpu_custom_call.1} parent=1 // pred_region
      _
    $region29: #{tpu_custom_call.1} parent=1 // pred_fallthru
      _
    // Predicated region
    $region30: #{tpu_custom_call.1} parent=1 // pred_check
      _
    $region31: #{tpu_custom_call.1} parent=1 // pred_check_branch
      %73 = sbr.rel (0) target = $region33
    $region32: #{tpu_custom_call.1} parent=1 // pred_region
      _
    $region33: #{tpu_custom_call.1} parent=1 // pred_fallthru
      _
    // Predicated region
    $region34: #{tpu_custom_call.1} parent=1 // pred_check
      _
    $region35: #{tpu_custom_call.1} parent=1 // pred_check_branch
      %75 = sbr.rel (0) target = $region37
    $region36: #{tpu_custom_call.1} parent=1 // pred_region
      _
    $region37: #{tpu_custom_call.1} parent=1 // pred_fallthru
      _
    // Predicated region
    $region38: #{tpu_custom_call.1} parent=1 // pred_check
      _
    $region39: #{tpu_custom_call.1} parent=1 // pred_check_branch
      %77 = sbr.rel (0) target = $region41
    $region40: #{tpu_custom_call.1} parent=1 // pred_region
      %78 = dma.done [#allocation3], 256
    $region41: #{tpu_custom_call.1} parent=1 // pred_fallthru
      _
    // Predicated region
    $region42: #{tpu_custom_call.1} parent=1 // pred_check
      _
    $region43: #{tpu_custom_call.1} parent=1 // pred_check_branch
      %80 = sbr.rel (0) target = $region45
    $region44: #{tpu_custom_call.1} parent=1 // pred_region
      %81 = dma.done [#allocation6], 512
    $region45: #{tpu_custom_call.1} parent=1 // pred_fallthru
      _
    // Predicated region
    $region46: #{tpu_custom_call.1} parent=1 // pred_check
      _
    $region47: #{tpu_custom_call.1} parent=1 // pred_check_branch
      %83 = sbr.rel (0) target = $region49
    $region48: #{tpu_custom_call.1} parent=1 // pred_region
      %84 = dma.done [#allocation6], 512
    $region49: #{tpu_custom_call.1} parent=1 // pred_fallthru
      _
    // Predicated region
    $region50: #{tpu_custom_call.1} parent=1 // pred_check
      _
    $region51: #{tpu_custom_call.1} parent=1 // pred_check_branch
      %86 = sbr.rel (0) target = $region53
    $region52: #{tpu_custom_call.1} parent=1 // pred_region
      %87 = dma.done [#allocation9], 512
    $region53: #{tpu_custom_call.1} parent=1 // pred_fallthru
      _
    %v88 = vld [vmem:[#allocation2] sm:$0xff]
    %v89 = vld [vmem:[#allocation2 + $0x8] sm:$0xff]
    %v90 = vld [vmem:[%s1] sm:$0xff]
    %v91 = vld [vmem:[%s1 + $0x8] sm:$0xff]
    %v92 = vld [vmem:[%s1 + $0x10] sm:$0xff]
    %v93 = vld [vmem:[%s1 + $0x18] sm:$0xff]
    %v94 = vld [vmem:[%s3] sm:$0x1]
    %v96 = vlaneseq
    %v97 = vshrl.u32 %v96, 7
    %v98 = vsub.s32 0, %v97
    %v99 = vrot.slane %v94, %v98
    %vm101 = vcmask 261120
    %v103 = vsel %vm101, %v88, 0
    %v106 = vsel %vm101, %v89, 0
    %108 = vmatprep.subr.mxu0 0.0
    %109 = vmatpush1.msra.mxu0 %v90
    %110 = vmatprep.subr.mxu0 0.0
    %111 = vmatpush1.msra.mxu0 %v91
    %112 = vmatprep.subr.mxu0 0.0
    %113 = vmatpush1.msra.mxu0 %v92
    %114 = vmatprep.subr.mxu0 0.0
    %115 = vmatpush1.msra.mxu0 %v93
    %116 = vmatprep.subr.mxu0 0.0
    %117 = vmatpush1.msra.mxu0 0.0
    %118 = vmatprep.subr.mxu0 0.0
    %119 = vmatpush1.msra.mxu0 0.0
    %120 = vmatprep.subr.mxu0 0.0
    %121 = vmatpush1.msra.mxu0 0.0
    %122 = vmatprep.subr.mxu0 0.0
    %123 = vmatpush1.msra.mxu0 0.0
    %124 = vmatprep.subr.mxu0 0.0
    %125 = vmatpush1.msra.mxu0 0.0
    %126 = vmatprep.subr.mxu0 0.0
    %127 = vmatpush1.msra.mxu0 0.0
    %128 = vmatprep.subr.mxu0 0.0
    %129 = vmatpush1.msra.mxu0 0.0
    %130 = vmatprep.subr.mxu0 0.0
    %131 = vmatpush1.msra.mxu0 0.0
    %132 = vmatprep.subr.mxu0 0.0
    %133 = vmatpush1.msra.mxu0 0.0
    %134 = vmatprep.subr.mxu0 0.0
    %135 = vmatpush1.msra.mxu0 0.0
    %136 = vmatprep.subr.mxu0 0.0
    %137 = vmatpush1.msra.mxu0 0.0
    %138 = vmatprep.subr.mxu0 0.0
    %139 = vmatpush1.msra.mxu0 0.0
    %140 = vmatprep.subr.mxu0 0.0
    %141 = vmatpush1.msra.mxu0 0.0
    %142 = vmatprep.subr.mxu0 0.0
    %143 = vmatpush1.msra.mxu0 0.0
    %144 = vmatprep.subr.mxu0 0.0
    %145 = vmatpush1.msra.mxu0 0.0
    %146 = vmatprep.subr.mxu0 0.0
    %147 = vmatpush1.msra.mxu0 0.0
    %148 = vmatprep.subr.mxu0 0.0
    %149 = vmatpush1.msra.mxu0 0.0
    %150 = vmatprep.subr.mxu0 0.0
    %151 = vmatpush1.msra.mxu0 0.0
    %152 = vmatprep.subr.mxu0 0.0
    %153 = vmatpush1.msra.mxu0 0.0
    %154 = vmatprep.subr.mxu0 0.0
    %155 = vmatpush1.msra.mxu0 0.0
    %156 = vmatprep.subr.mxu0 0.0
    %157 = vmatpush1.msra.mxu0 0.0
    %158 = vmatprep.subr.mxu0 0.0
    %159 = vmatpush1.msra.mxu0 0.0
    %160 = vmatprep.subr.mxu0 0.0
    %161 = vmatpush1.msra.mxu0 0.0
    %162 = vmatprep.subr.mxu0 0.0
    %163 = vmatpush1.msra.mxu0 0.0
    %164 = vmatprep.subr.mxu0 0.0
    %165 = vmatpush1.msra.mxu0 0.0
    %166 = vmatprep.subr.mxu0 0.0
    %167 = vmatpush1.msra.mxu0 0.0
    %168 = vmatprep.subr.mxu0 0.0
    %169 = vmatpush1.msra.mxu0 0.0
    %170 = vmatprep.subr.mxu0 0.0
    %171 = vmatpush1.msra.mxu0 0.0
    %172 = vmatprep.mubr.f32.mxu0 0.0
    %173 = vmatmul.mubr.f32.gmra.mrb[0].mxu0 %v103
    %v174 = vpop.f32.mrb[0].mxu0
    %v175 = vadd.f32 %v99, %v174
    %v176 = vpop.f32.mrb[0].mxu0
    %177 = vmatprep.mubr.f32.mxu0 0.0
    %178 = vmatmul.mubr.f32.gmra.mrb[0].mxu0 %v106
    %v179 = vpop.f32.mrb[0].mxu0
    %v180 = vadd.f32 %v99, %v179
    %v181 = vpop.f32.mrb[0].mxu0
    %182 = vdwg.mxu0
    %v183 = vld [vmem:[#allocation8] sm:$0xff]
    %v184 = vld [vmem:[#allocation8 + $0x8] sm:$0xff]
    %v185 = vld [vmem:[#allocation8 + $0x10] sm:$0xff]
    %v186 = vld [vmem:[#allocation8 + $0x18] sm:$0xff]
    %v187 = vld [vmem:[%s6] sm:$0x1]
    %v189 = vlaneseq
    %v190 = vshrl.u32 %v189, 7
    %v191 = vsub.s32 0, %v190
    %v192 = vrot.slane %v187, %v191
    %194 = vmatprep.subr.mxu0 0.0
    %195 = vmatpush1.msra.mxu0 %v183
    %196 = vmatprep.subr.mxu0 0.0
    %197 = vmatpush1.msra.mxu0 %v184
    %198 = vmatprep.subr.mxu0 0.0
    %199 = vmatpush1.msra.mxu0 %v185
    %200 = vmatprep.subr.mxu0 0.0
    %201 = vmatpush1.msra.mxu0 %v186
    %202 = vmatprep.subr.mxu0 0.0
    %203 = vmatpush1.msra.mxu0 0.0
    %204 = vmatprep.subr.mxu0 0.0
    %205 = vmatpush1.msra.mxu0 0.0
    %206 = vmatprep.subr.mxu0 0.0
    %207 = vmatpush1.msra.mxu0 0.0
    %208 = vmatprep.subr.mxu0 0.0
    %209 = vmatpush1.msra.mxu0 0.0
    %210 = vmatprep.subr.mxu0 0.0
    %211 = vmatpush1.msra.mxu0 0.0
    %212 = vmatprep.subr.mxu0 0.0
    %213 = vmatpush1.msra.mxu0 0.0
    %214 = vmatprep.subr.mxu0 0.0
    %215 = vmatpush1.msra.mxu0 0.0
    %216 = vmatprep.subr.mxu0 0.0
    %217 = vmatpush1.msra.mxu0 0.0
    %218 = vmatprep.subr.mxu0 0.0
    %219 = vmatpush1.msra.mxu0 0.0
    %220 = vmatprep.subr.mxu0 0.0
    %221 = vmatpush1.msra.mxu0 0.0
    %222 = vmatprep.subr.mxu0 0.0
    %223 = vmatpush1.msra.mxu0 0.0
    %224 = vmatprep.subr.mxu0 0.0
    %225 = vmatpush1.msra.mxu0 0.0
    %226 = vmatprep.subr.mxu0 0.0
    %227 = vmatpush1.msra.mxu0 0.0
    %228 = vmatprep.subr.mxu0 0.0
    %229 = vmatpush1.msra.mxu0 0.0
    %230 = vmatprep.subr.mxu0 0.0
    %231 = vmatpush1.msra.mxu0 0.0
    %232 = vmatprep.subr.mxu0 0.0
    %233 = vmatpush1.msra.mxu0 0.0
    %234 = vmatprep.subr.mxu0 0.0
    %235 = vmatpush1.msra.mxu0 0.0
    %236 = vmatprep.subr.mxu0 0.0
    %237 = vmatpush1.msra.mxu0 0.0
    %238 = vmatprep.subr.mxu0 0.0
    %239 = vmatpush1.msra.mxu0 0.0
    %240 = vmatprep.subr.mxu0 0.0
    %241 = vmatpush1.msra.mxu0 0.0
    %242 = vmatprep.subr.mxu0 0.0
    %243 = vmatpush1.msra.mxu0 0.0
    %244 = vmatprep.subr.mxu0 0.0
    %245 = vmatpush1.msra.mxu0 0.0
    %246 = vmatprep.subr.mxu0 0.0
    %247 = vmatpush1.msra.mxu0 0.0
    %248 = vmatprep.subr.mxu0 0.0
    %249 = vmatpush1.msra.mxu0 0.0
    %250 = vmatprep.subr.mxu0 0.0
    %251 = vmatpush1.msra.mxu0 0.0
    %252 = vmatprep.subr.mxu0 0.0
    %253 = vmatpush1.msra.mxu0 0.0
    %254 = vmatprep.subr.mxu0 0.0
    %255 = vmatpush1.msra.mxu0 0.0
    %256 = vmatprep.subr.mxu0 0.0
    %257 = vmatpush1.msra.mxu0 0.0
    %258 = vmatprep.mubr.f32.mxu0 0.0
    %259 = vmatmul.mubr.f32.gmra.mrb[0].mxu0 %v103
    %v260 = vpop.f32.mrb[0].mxu0
    %v261 = vadd.f32 %v192, %v260
    %v262 = vpop.f32.mrb[0].mxu0
    %263 = vmatprep.mubr.f32.mxu0 0.0
    %264 = vmatmul.mubr.f32.gmra.mrb[0].mxu0 %v106
    %v265 = vpop.f32.mrb[0].mxu0
    %v266 = vadd.f32 %v192, %v265
    %v267 = vpop.f32.mrb[0].mxu0
    %268 = vdwg.mxu0
    %v269 = vlaneseq
    %v270 = vand.u32 %v269, 127
    %vm271 = vcmp.lt.s32.totalorder %v270, 0
    %v272 = vsub.s32 0, %v270
    %v273 = vsel %vm271, %v272, %v270
    %v274 = vshrl.u32 %v273, 5
    %v275 = vand.u32 %v273, 31
    %v276 = vsub.s32 0, %v275
    %v277 = vsel %vm271, %v276, %v275
    %vm278 = vcmp.ne.s32.totalorder %v277, 0
    %vm279 = vcmp.lt.s32.totalorder %v277, 0
    %vm280 = vmand %vm279, %vm278
    %v281 = vadd.s32 %v277, 32
    %v282 = vsel %vm280, %v281, %v277
    %vm283 = vcmp.lt.s32.totalorder %v282, 16
    %vm284 = vcmp.lt.s32.totalorder %v270, 16
    %v285 = vsel %vm283, 1, 0
    %vm286 = vcmp.eq.s32.totalorder %v285, 1
    %v289 = vrot.slane %v180, 7
    %vm290 = vcmask 1041409
    %v291 = vsel %vm290, %v289, %v175
    %v293 = vrot.slane %v175, 7
    %v294 = vrot.slane %v180, 6
    %v295 = vsel %vm290, %v294, %v293
    %v297 = vsel %vm286, %v291, %v295
    %v298 = vrot.slane %v175, 1
    %v299 = vsel %vm290, %v180, %v298
    %v301 = vrot.slane %v175, 6
    %v302 = vrot.slane %v180, 5
    %v303 = vsel %vm290, %v302, %v301
    %v305 = vsel %vm286, %v299, %v303
    %v306 = vrot.slane %v175, 2
    %v307 = vrot.slane %v180, 1
    %v308 = vsel %vm290, %v307, %v306
    %v310 = vrot.slane %v175, 5
    %v311 = vrot.slane %v180, 4
    %v312 = vsel %vm290, %v311, %v310
    %v314 = vsel %vm286, %v308, %v312
    %v315 = vrot.slane %v175, 3
    %v316 = vrot.slane %v180, 2
    %v317 = vsel %vm290, %v316, %v315
    %v319 = vrot.slane %v175, 4
    %v320 = vrot.slane %v180, 3
    %v321 = vsel %vm290, %v320, %v319
    %v323 = vsel %vm286, %v317, %v321
    %v324 = vsel %vm286, %v321, %v317
    %v325 = vsel %vm286, %v312, %v308
    %v326 = vsel %vm286, %v303, %v299
    %v327 = vsel %vm286, %v295, %v291
    %v328 = vld [vmem:[#allocation5] sm:$0xff]
    %v329 = vld [vmem:[#allocation5 + $0x8] sm:$0xff]
    %v330 = vld [vmem:[#allocation5 + $0x10] sm:$0xff]
    %v331 = vld [vmem:[#allocation5 + $0x18] sm:$0xff]
    %v333 = vsel %vm101, 0.0, 0
    %335 = vmatprep.subr.mxu0 0.0
    %336 = vmatpush1.msra.mxu0 %v328
    %337 = vmatprep.subr.mxu0 0.0
    %338 = vmatpush1.msra.mxu0 %v329
    %339 = vmatprep.subr.mxu0 0.0
    %340 = vmatpush1.msra.mxu0 %v330
    %341 = vmatprep.subr.mxu0 0.0
    %342 = vmatpush1.msra.mxu0 %v331
    %343 = vmatprep.subr.mxu0 0.0
    %344 = vmatpush1.msra.mxu0 0.0
    %345 = vmatprep.subr.mxu0 0.0
    %346 = vmatpush1.msra.mxu0 0.0
    %347 = vmatprep.subr.mxu0 0.0
    %348 = vmatpush1.msra.mxu0 0.0
    %349 = vmatprep.subr.mxu0 0.0
    %350 = vmatpush1.msra.mxu0 0.0
    %351 = vmatprep.subr.mxu0 0.0
    %352 = vmatpush1.msra.mxu0 0.0
    %353 = vmatprep.subr.mxu0 0.0
    %354 = vmatpush1.msra.mxu0 0.0
    %355 = vmatprep.subr.mxu0 0.0
    %356 = vmatpush1.msra.mxu0 0.0
    %357 = vmatprep.subr.mxu0 0.0
    %358 = vmatpush1.msra.mxu0 0.0
    %359 = vmatprep.subr.mxu0 0.0
    %360 = vmatpush1.msra.mxu0 0.0
    %361 = vmatprep.subr.mxu0 0.0
    %362 = vmatpush1.msra.mxu0 0.0
    %363 = vmatprep.subr.mxu0 0.0
    %364 = vmatpush1.msra.mxu0 0.0
    %365 = vmatprep.subr.mxu0 0.0
    %366 = vmatpush1.msra.mxu0 0.0
    %367 = vmatprep.subr.mxu0 0.0
    %368 = vmatpush1.msra.mxu0 0.0
    %369 = vmatprep.subr.mxu0 0.0
    %370 = vmatpush1.msra.mxu0 0.0
    %371 = vmatprep.subr.mxu0 0.0
    %372 = vmatpush1.msra.mxu0 0.0
    %373 = vmatprep.subr.mxu0 0.0
    %374 = vmatpush1.msra.mxu0 0.0
    %375 = vmatprep.subr.mxu0 0.0
    %376 = vmatpush1.msra.mxu0 0.0
    %377 = vmatprep.subr.mxu0 0.0
    %378 = vmatpush1.msra.mxu0 0.0
    %379 = vmatprep.subr.mxu0 0.0
    %380 = vmatpush1.msra.mxu0 0.0
    %381 = vmatprep.subr.mxu0 0.0
    %382 = vmatpush1.msra.mxu0 0.0
    %383 = vmatprep.subr.mxu0 0.0
    %384 = vmatpush1.msra.mxu0 0.0
    %385 = vmatprep.subr.mxu0 0.0
    %386 = vmatpush1.msra.mxu0 0.0
    %387 = vmatprep.subr.mxu0 0.0
    %388 = vmatpush1.msra.mxu0 0.0
    %389 = vmatprep.subr.mxu0 0.0
    %390 = vmatpush1.msra.mxu0 0.0
    %391 = vmatprep.subr.mxu0 0.0
    %392 = vmatpush1.msra.mxu0 0.0
    %393 = vmatprep.subr.mxu0 0.0
    %394 = vmatpush1.msra.mxu0 0.0
    %395 = vmatprep.subr.mxu0 0.0
    %396 = vmatpush1.msra.mxu0 0.0
    %397 = vmatprep.subr.mxu0 0.0
    %398 = vmatpush1.msra.mxu0 0.0
    %399 = vmatprep.mubr.f32.mxu0 0.0
    %400 = vmatmul.mubr.f32.gmra.mrb[0].mxu0 %v333
    %v401 = vpop.f32.mrb[0].mxu0
    %v402 = vadd.f32 0.0, %v401
    %v403 = vpop.f32.mrb[0].mxu0
    %404 = vdwg.mxu0
    %v405 = vadd.f32 %v297, %v402
    %v406 = vxor.u32 %v405, 2147483648
    %v407 = vmul.f32 %v406, 1.442695
    %v408 = vpow.pop %v407
    %v409 = vadd.f32 %v408, 1.0
    %v410 = vrcp.pop %v409
    %v411 = vmul.f32 1.0, %v410
    %v412 = vtanh.pop %v405
    %v413 = vmul.f32 %v411, 0.0
    %415 = vrot.lane.b32.xlu0 %v412, 32
    %v416 = vpop.permute.xlu0 %415
    %v418 = vmul.f32 %v411, %v416
    %420 = vrot.lane.b32.xlu0 %v418, 32
    %v421 = vpop.permute.xlu0 %420
    %v423 = vadd.f32 %v413, %v421
    %v424 = vtanh.pop %v423
    %426 = vrot.lane.b32.xlu0 %v424, 32
    %v427 = vpop.permute.xlu0 %426
    %v429 = vmul.f32 %v411, %v427
    %431 = vrot.lane.b32.xlu0 %v429, 64
    %v432 = vpop.permute.xlu0 %431
    %v433 = vsel %vm101, %v432, 0
    %435 = vmatprep.subr.mxu0 0.0
    %436 = vmatpush1.msra.mxu0 %v328
    %437 = vmatprep.subr.mxu0 0.0
    %438 = vmatpush1.msra.mxu0 %v329
    %439 = vmatprep.subr.mxu0 0.0
    %440 = vmatpush1.msra.mxu0 %v330
    %441 = vmatprep.subr.mxu0 0.0
    %442 = vmatpush1.msra.mxu0 %v331
    %443 = vmatprep.subr.mxu0 0.0
    %444 = vmatpush1.msra.mxu0 0.0
    %445 = vmatprep.subr.mxu0 0.0
    %446 = vmatpush1.msra.mxu0 0.0
    %447 = vmatprep.subr.mxu0 0.0
    %448 = vmatpush1.msra.mxu0 0.0
    %449 = vmatprep.subr.mxu0 0.0
    %450 = vmatpush1.msra.mxu0 0.0
    %451 = vmatprep.subr.mxu0 0.0
    %452 = vmatpush1.msra.mxu0 0.0
    %453 = vmatprep.subr.mxu0 0.0
    %454 = vmatpush1.msra.mxu0 0.0
    %455 = vmatprep.subr.mxu0 0.0
    %456 = vmatpush1.msra.mxu0 0.0
    %457 = vmatprep.subr.mxu0 0.0
    %458 = vmatpush1.msra.mxu0 0.0
    %459 = vmatprep.subr.mxu0 0.0
    %460 = vmatpush1.msra.mxu0 0.0
    %461 = vmatprep.subr.mxu0 0.0
    %462 = vmatpush1.msra.mxu0 0.0
    %463 = vmatprep.subr.mxu0 0.0
    %464 = vmatpush1.msra.mxu0 0.0
    %465 = vmatprep.subr.mxu0 0.0
    %466 = vmatpush1.msra.mxu0 0.0
    %467 = vmatprep.subr.mxu0 0.0
    %468 = vmatpush1.msra.mxu0 0.0
    %469 = vmatprep.subr.mxu0 0.0
    %470 = vmatpush1.msra.mxu0 0.0
    %471 = vmatprep.subr.mxu0 0.0
    %472 = vmatpush1.msra.mxu0 0.0
    %473 = vmatprep.subr.mxu0 0.0
    %474 = vmatpush1.msra.mxu0 0.0
    %475 = vmatprep.subr.mxu0 0.0
    %476 = vmatpush1.msra.mxu0 0.0
    %477 = vmatprep.subr.mxu0 0.0
    %478 = vmatpush1.msra.mxu0 0.0
    %479 = vmatprep.subr.mxu0 0.0
    %480 = vmatpush1.msra.mxu0 0.0
    %481 = vmatprep.subr.mxu0 0.0
    %482 = vmatpush1.msra.mxu0 0.0
    %483 = vmatprep.subr.mxu0 0.0
    %484 = vmatpush1.msra.mxu0 0.0
    %485 = vmatprep.subr.mxu0 0.0
    %486 = vmatpush1.msra.mxu0 0.0
    %487 = vmatprep.subr.mxu0 0.0
    %488 = vmatpush1.msra.mxu0 0.0
    %489 = vmatprep.subr.mxu0 0.0
    %490 = vmatpush1.msra.mxu0 0.0
    %491 = vmatprep.subr.mxu0 0.0
    %492 = vmatpush1.msra.mxu0 0.0
    %493 = vmatprep.subr.mxu0 0.0
    %494 = vmatpush1.msra.mxu0 0.0
    %495 = vmatprep.subr.mxu0 0.0
    %496 = vmatpush1.msra.mxu0 0.0
    %497 = vmatprep.subr.mxu0 0.0
    %498 = vmatpush1.msra.mxu0 0.0
    %499 = vmatprep.mubr.f32.mxu0 0.0
    %500 = vmatmul.mubr.f32.gmra.mrb[0].mxu0 %v433
    %v501 = vpop.f32.mrb[0].mxu0
    %v502 = vadd.f32 0.0, %v501
    %v503 = vpop.f32.mrb[0].mxu0
    %504 = vdwg.mxu0
    %v505 = vadd.f32 %v305, %v502
    %v506 = vxor.u32 %v505, 2147483648
    %v507 = vmul.f32 %v506, 1.442695
    %v508 = vpow.pop %v507
    %v509 = vadd.f32 %v508, 1.0
    %v510 = vrcp.pop %v509
    %v511 = vmul.f32 1.0, %v510
    %v512 = vtanh.pop %v505
    %v513 = vmul.f32 %v511, %v423
    %515 = vrot.lane.b32.xlu0 %v512, 32
    %v516 = vpop.permute.xlu0 %515
    %v518 = vmul.f32 %v511, %v516
    %520 = vrot.lane.b32.xlu0 %v518, 32
    %v521 = vpop.permute.xlu0 %520
    %v523 = vadd.f32 %v513, %v521
    %v524 = vtanh.pop %v523
    %526 = vrot.lane.b32.xlu0 %v524, 32
    %v527 = vpop.permute.xlu0 %526
    %v529 = vmul.f32 %v511, %v527
    %531 = vrot.lane.b32.xlu0 %v529, 64
    %v532 = vpop.permute.xlu0 %531
    %v533 = vsel %vm101, %v532, 0
    %535 = vmatprep.subr.mxu0 0.0
    %536 = vmatpush1.msra.mxu0 %v328
    %537 = vmatprep.subr.mxu0 0.0
    %538 = vmatpush1.msra.mxu0 %v329
    %539 = vmatprep.subr.mxu0 0.0
    %540 = vmatpush1.msra.mxu0 %v330
    %541 = vmatprep.subr.mxu0 0.0
    %542 = vmatpush1.msra.mxu0 %v331
    %543 = vmatprep.subr.mxu0 0.0
    %544 = vmatpush1.msra.mxu0 0.0
    %545 = vmatprep.subr.mxu0 0.0
    %546 = vmatpush1.msra.mxu0 0.0
    %547 = vmatprep.subr.mxu0 0.0
    %548 = vmatpush1.msra.mxu0 0.0
    %549 = vmatprep.subr.mxu0 0.0
    %550 = vmatpush1.msra.mxu0 0.0
    %551 = vmatprep.subr.mxu0 0.0
    %552 = vmatpush1.msra.mxu0 0.0
    %553 = vmatprep.subr.mxu0 0.0
    %554 = vmatpush1.msra.mxu0 0.0
    %555 = vmatprep.subr.mxu0 0.0
    %556 = vmatpush1.msra.mxu0 0.0
    %557 = vmatprep.subr.mxu0 0.0
    %558 = vmatpush1.msra.mxu0 0.0
    %559 = vmatprep.subr.mxu0 0.0
    %560 = vmatpush1.msra.mxu0 0.0
    %561 = vmatprep.subr.mxu0 0.0
    %562 = vmatpush1.msra.mxu0 0.0
    %563 = vmatprep.subr.mxu0 0.0
    %564 = vmatpush1.msra.mxu0 0.0
    %565 = vmatprep.subr.mxu0 0.0
    %566 = vmatpush1.msra.mxu0 0.0
    %567 = vmatprep.subr.mxu0 0.0
    %568 = vmatpush1.msra.mxu0 0.0
    %569 = vmatprep.subr.mxu0 0.0
    %570 = vmatpush1.msra.mxu0 0.0
    %571 = vmatprep.subr.mxu0 0.0
    %572 = vmatpush1.msra.mxu0 0.0
    %573 = vmatprep.subr.mxu0 0.0
    %574 = vmatpush1.msra.mxu0 0.0
    %575 = vmatprep.subr.mxu0 0.0
    %576 = vmatpush1.msra.mxu0 0.0
    %577 = vmatprep.subr.mxu0 0.0
    %578 = vmatpush1.msra.mxu0 0.0
    %579 = vmatprep.subr.mxu0 0.0
    %580 = vmatpush1.msra.mxu0 0.0
    %581 = vmatprep.subr.mxu0 0.0
    %582 = vmatpush1.msra.mxu0 0.0
    %583 = vmatprep.subr.mxu0 0.0
    %584 = vmatpush1.msra.mxu0 0.0
    %585 = vmatprep.subr.mxu0 0.0
    %586 = vmatpush1.msra.mxu0 0.0
    %587 = vmatprep.subr.mxu0 0.0
    %588 = vmatpush1.msra.mxu0 0.0
    %589 = vmatprep.subr.mxu0 0.0
    %590 = vmatpush1.msra.mxu0 0.0
    %591 = vmatprep.subr.mxu0 0.0
    %592 = vmatpush1.msra.mxu0 0.0
    %593 = vmatprep.subr.mxu0 0.0
    %594 = vmatpush1.msra.mxu0 0.0
    %595 = vmatprep.subr.mxu0 0.0
    %596 = vmatpush1.msra.mxu0 0.0
    %597 = vmatprep.subr.mxu0 0.0
    %598 = vmatpush1.msra.mxu0 0.0
    %599 = vmatprep.mubr.f32.mxu0 0.0
    %600 = vmatmul.mubr.f32.gmra.mrb[0].mxu0 %v533
    %v601 = vpop.f32.mrb[0].mxu0
    %v602 = vadd.f32 0.0, %v601
    %v603 = vpop.f32.mrb[0].mxu0
    %604 = vdwg.mxu0
    %v605 = vadd.f32 %v314, %v602
    %v606 = vxor.u32 %v605, 2147483648
    %v607 = vmul.f32 %v606, 1.442695
    %v608 = vpow.pop %v607
    %v609 = vadd.f32 %v608, 1.0
    %v610 = vrcp.pop %v609
    %v611 = vmul.f32 1.0, %v610
    %v612 = vtanh.pop %v605
    %v613 = vmul.f32 %v611, %v523
    %615 = vrot.lane.b32.xlu0 %v612, 32
    %v616 = vpop.permute.xlu0 %615
    %v618 = vmul.f32 %v611, %v616
    %620 = vrot.lane.b32.xlu0 %v618, 32
    %v621 = vpop.permute.xlu0 %620
    %v623 = vadd.f32 %v613, %v621
    %v624 = vtanh.pop %v623
    %626 = vrot.lane.b32.xlu0 %v624, 32
    %v627 = vpop.permute.xlu0 %626
    %v629 = vmul.f32 %v611, %v627
    %631 = vrot.lane.b32.xlu0 %v629, 64
    %v632 = vpop.permute.xlu0 %631
    %v633 = vsel %vm101, %v632, 0
    %635 = vmatprep.subr.mxu0 0.0
    %636 = vmatpush1.msra.mxu0 %v328
    %637 = vmatprep.subr.mxu0 0.0
    %638 = vmatpush1.msra.mxu0 %v329
    %639 = vmatprep.subr.mxu0 0.0
    %640 = vmatpush1.msra.mxu0 %v330
    %641 = vmatprep.subr.mxu0 0.0
    %642 = vmatpush1.msra.mxu0 %v331
    %643 = vmatprep.subr.mxu0 0.0
    %644 = vmatpush1.msra.mxu0 0.0
    %645 = vmatprep.subr.mxu0 0.0
    %646 = vmatpush1.msra.mxu0 0.0
    %647 = vmatprep.subr.mxu0 0.0
    %648 = vmatpush1.msra.mxu0 0.0
    %649 = vmatprep.subr.mxu0 0.0
    %650 = vmatpush1.msra.mxu0 0.0
    %651 = vmatprep.subr.mxu0 0.0
    %652 = vmatpush1.msra.mxu0 0.0
    %653 = vmatprep.subr.mxu0 0.0
    %654 = vmatpush1.msra.mxu0 0.0
    %655 = vmatprep.subr.mxu0 0.0
    %656 = vmatpush1.msra.mxu0 0.0
    %657 = vmatprep.subr.mxu0 0.0
    %658 = vmatpush1.msra.mxu0 0.0
    %659 = vmatprep.subr.mxu0 0.0
    %660 = vmatpush1.msra.mxu0 0.0
    %661 = vmatprep.subr.mxu0 0.0
    %662 = vmatpush1.msra.mxu0 0.0
    %663 = vmatprep.subr.mxu0 0.0
    %664 = vmatpush1.msra.mxu0 0.0
    %665 = vmatprep.subr.mxu0 0.0
    %666 = vmatpush1.msra.mxu0 0.0
    %667 = vmatprep.subr.mxu0 0.0
    %668 = vmatpush1.msra.mxu0 0.0
    %669 = vmatprep.subr.mxu0 0.0
    %670 = vmatpush1.msra.mxu0 0.0
    %671 = vmatprep.subr.mxu0 0.0
    %672 = vmatpush1.msra.mxu0 0.0
    %673 = vmatprep.subr.mxu0 0.0
    %674 = vmatpush1.msra.mxu0 0.0
    %675 = vmatprep.subr.mxu0 0.0
    %676 = vmatpush1.msra.mxu0 0.0
    %677 = vmatprep.subr.mxu0 0.0
    %678 = vmatpush1.msra.mxu0 0.0
    %679 = vmatprep.subr.mxu0 0.0
    %680 = vmatpush1.msra.mxu0 0.0
    %681 = vmatprep.subr.mxu0 0.0
    %682 = vmatpush1.msra.mxu0 0.0
    %683 = vmatprep.subr.mxu0 0.0
    %684 = vmatpush1.msra.mxu0 0.0
    %685 = vmatprep.subr.mxu0 0.0
    %686 = vmatpush1.msra.mxu0 0.0
    %687 = vmatprep.subr.mxu0 0.0
    %688 = vmatpush1.msra.mxu0 0.0
    %689 = vmatprep.subr.mxu0 0.0
    %690 = vmatpush1.msra.mxu0 0.0
    %691 = vmatprep.subr.mxu0 0.0
    %692 = vmatpush1.msra.mxu0 0.0
    %693 = vmatprep.subr.mxu0 0.0
    %694 = vmatpush1.msra.mxu0 0.0
    %695 = vmatprep.subr.mxu0 0.0
    %696 = vmatpush1.msra.mxu0 0.0
    %697 = vmatprep.subr.mxu0 0.0
    %698 = vmatpush1.msra.mxu0 0.0
    %699 = vmatprep.mubr.f32.mxu0 0.0
    %700 = vmatmul.mubr.f32.gmra.mrb[0].mxu0 %v633
    %v701 = vpop.f32.mrb[0].mxu0
    %v702 = vadd.f32 0.0, %v701
    %v703 = vpop.f32.mrb[0].mxu0
    %704 = vdwg.mxu0
    %v705 = vadd.f32 %v323, %v702
    %v706 = vxor.u32 %v705, 2147483648
    %v707 = vmul.f32 %v706, 1.442695
    %v708 = vpow.pop %v707
    %v709 = vadd.f32 %v708, 1.0
    %v710 = vrcp.pop %v709
    %v711 = vmul.f32 1.0, %v710
    %v712 = vtanh.pop %v705
    %v713 = vmul.f32 %v711, %v623
    %715 = vrot.lane.b32.xlu0 %v712, 32
    %v716 = vpop.permute.xlu0 %715
    %v718 = vmul.f32 %v711, %v716
    %720 = vrot.lane.b32.xlu0 %v718, 32
    %v721 = vpop.permute.xlu0 %720
    %v723 = vadd.f32 %v713, %v721
    %v724 = vtanh.pop %v723
    %726 = vrot.lane.b32.xlu0 %v724, 32
    %v727 = vpop.permute.xlu0 %726
    %v729 = vmul.f32 %v711, %v727
    %731 = vrot.lane.b32.xlu0 %v729, 64
    %v732 = vpop.permute.xlu0 %731
    %v733 = vsel %vm101, %v732, 0
    %735 = vmatprep.subr.mxu0 0.0
    %736 = vmatpush1.msra.mxu0 %v328
    %737 = vmatprep.subr.mxu0 0.0
    %738 = vmatpush1.msra.mxu0 %v329
    %739 = vmatprep.subr.mxu0 0.0
    %740 = vmatpush1.msra.mxu0 %v330
    %741 = vmatprep.subr.mxu0 0.0
    %742 = vmatpush1.msra.mxu0 %v331
    %743 = vmatprep.subr.mxu0 0.0
    %744 = vmatpush1.msra.mxu0 0.0
    %745 = vmatprep.subr.mxu0 0.0
    %746 = vmatpush1.msra.mxu0 0.0
    %747 = vmatprep.subr.mxu0 0.0
    %748 = vmatpush1.msra.mxu0 0.0
    %749 = vmatprep.subr.mxu0 0.0
    %750 = vmatpush1.msra.mxu0 0.0
    %751 = vmatprep.subr.mxu0 0.0
    %752 = vmatpush1.msra.mxu0 0.0
    %753 = vmatprep.subr.mxu0 0.0
    %754 = vmatpush1.msra.mxu0 0.0
    %755 = vmatprep.subr.mxu0 0.0
    %756 = vmatpush1.msra.mxu0 0.0
    %757 = vmatprep.subr.mxu0 0.0
    %758 = vmatpush1.msra.mxu0 0.0
    %759 = vmatprep.subr.mxu0 0.0
    %760 = vmatpush1.msra.mxu0 0.0
    %761 = vmatprep.subr.mxu0 0.0
    %762 = vmatpush1.msra.mxu0 0.0
    %763 = vmatprep.subr.mxu0 0.0
    %764 = vmatpush1.msra.mxu0 0.0
    %765 = vmatprep.subr.mxu0 0.0
    %766 = vmatpush1.msra.mxu0 0.0
    %767 = vmatprep.subr.mxu0 0.0
    %768 = vmatpush1.msra.mxu0 0.0
    %769 = vmatprep.subr.mxu0 0.0
    %770 = vmatpush1.msra.mxu0 0.0
    %771 = vmatprep.subr.mxu0 0.0
    %772 = vmatpush1.msra.mxu0 0.0
    %773 = vmatprep.subr.mxu0 0.0
    %774 = vmatpush1.msra.mxu0 0.0
    %775 = vmatprep.subr.mxu0 0.0
    %776 = vmatpush1.msra.mxu0 0.0
    %777 = vmatprep.subr.mxu0 0.0
    %778 = vmatpush1.msra.mxu0 0.0
    %779 = vmatprep.subr.mxu0 0.0
    %780 = vmatpush1.msra.mxu0 0.0
    %781 = vmatprep.subr.mxu0 0.0
    %782 = vmatpush1.msra.mxu0 0.0
    %783 = vmatprep.subr.mxu0 0.0
    %784 = vmatpush1.msra.mxu0 0.0
    %785 = vmatprep.subr.mxu0 0.0
    %786 = vmatpush1.msra.mxu0 0.0
    %787 = vmatprep.subr.mxu0 0.0
    %788 = vmatpush1.msra.mxu0 0.0
    %789 = vmatprep.subr.mxu0 0.0
    %790 = vmatpush1.msra.mxu0 0.0
    %791 = vmatprep.subr.mxu0 0.0
    %792 = vmatpush1.msra.mxu0 0.0
    %793 = vmatprep.subr.mxu0 0.0
    %794 = vmatpush1.msra.mxu0 0.0
    %795 = vmatprep.subr.mxu0 0.0
    %796 = vmatpush1.msra.mxu0 0.0
    %797 = vmatprep.subr.mxu0 0.0
    %798 = vmatpush1.msra.mxu0 0.0
    %799 = vmatprep.mubr.f32.mxu0 0.0
    %800 = vmatmul.mubr.f32.gmra.mrb[0].mxu0 %v733
    %v801 = vpop.f32.mrb[0].mxu0
    %v802 = vadd.f32 0.0, %v801
    %v803 = vpop.f32.mrb[0].mxu0
    %804 = vdwg.mxu0
    %v805 = vadd.f32 %v324, %v802
    %v806 = vxor.u32 %v805, 2147483648
    %v807 = vmul.f32 %v806, 1.442695
    %v808 = vpow.pop %v807
    %v809 = vadd.f32 %v808, 1.0
    %v810 = vrcp.pop %v809
    %v811 = vmul.f32 1.0, %v810
    %v812 = vtanh.pop %v805
    %v813 = vmul.f32 %v811, %v723
    %815 = vrot.lane.b32.xlu0 %v812, 32
    %v816 = vpop.permute.xlu0 %815
    %v818 = vmul.f32 %v811, %v816
    %820 = vrot.lane.b32.xlu0 %v818, 32
    %v821 = vpop.permute.xlu0 %820
    %v823 = vadd.f32 %v813, %v821
    %v824 = vtanh.pop %v823
    %826 = vrot.lane.b32.xlu0 %v824, 32
    %v827 = vpop.permute.xlu0 %826
    %v829 = vmul.f32 %v811, %v827
    %831 = vrot.lane.b32.xlu0 %v829, 64
    %v832 = vpop.permute.xlu0 %831
    %v833 = vsel %vm101, %v832, 0
    %835 = vmatprep.subr.mxu0 0.0
    %836 = vmatpush1.msra.mxu0 %v328
    %837 = vmatprep.subr.mxu0 0.0
    %838 = vmatpush1.msra.mxu0 %v329
    %839 = vmatprep.subr.mxu0 0.0
    %840 = vmatpush1.msra.mxu0 %v330
    %841 = vmatprep.subr.mxu0 0.0
    %842 = vmatpush1.msra.mxu0 %v331
    %843 = vmatprep.subr.mxu0 0.0
    %844 = vmatpush1.msra.mxu0 0.0
    %845 = vmatprep.subr.mxu0 0.0
    %846 = vmatpush1.msra.mxu0 0.0
    %847 = vmatprep.subr.mxu0 0.0
    %848 = vmatpush1.msra.mxu0 0.0
    %849 = vmatprep.subr.mxu0 0.0
    %850 = vmatpush1.msra.mxu0 0.0
    %851 = vmatprep.subr.mxu0 0.0
    %852 = vmatpush1.msra.mxu0 0.0
    %853 = vmatprep.subr.mxu0 0.0
    %854 = vmatpush1.msra.mxu0 0.0
    %855 = vmatprep.subr.mxu0 0.0
    %856 = vmatpush1.msra.mxu0 0.0
    %857 = vmatprep.subr.mxu0 0.0
    %858 = vmatpush1.msra.mxu0 0.0
    %859 = vmatprep.subr.mxu0 0.0
    %860 = vmatpush1.msra.mxu0 0.0
    %861 = vmatprep.subr.mxu0 0.0
    %862 = vmatpush1.msra.mxu0 0.0
    %863 = vmatprep.subr.mxu0 0.0
    %864 = vmatpush1.msra.mxu0 0.0
    %865 = vmatprep.subr.mxu0 0.0
    %866 = vmatpush1.msra.mxu0 0.0
    %867 = vmatprep.subr.mxu0 0.0
    %868 = vmatpush1.msra.mxu0 0.0
    %869 = vmatprep.subr.mxu0 0.0
    %870 = vmatpush1.msra.mxu0 0.0
    %871 = vmatprep.subr.mxu0 0.0
    %872 = vmatpush1.msra.mxu0 0.0
    %873 = vmatprep.subr.mxu0 0.0
    %874 = vmatpush1.msra.mxu0 0.0
    %875 = vmatprep.subr.mxu0 0.0
    %876 = vmatpush1.msra.mxu0 0.0
    %877 = vmatprep.subr.mxu0 0.0
    %878 = vmatpush1.msra.mxu0 0.0
    %879 = vmatprep.subr.mxu0 0.0
    %880 = vmatpush1.msra.mxu0 0.0
    %881 = vmatprep.subr.mxu0 0.0
    %882 = vmatpush1.msra.mxu0 0.0
    %883 = vmatprep.subr.mxu0 0.0
    %884 = vmatpush1.msra.mxu0 0.0
    %885 = vmatprep.subr.mxu0 0.0
    %886 = vmatpush1.msra.mxu0 0.0
    %887 = vmatprep.subr.mxu0 0.0
    %888 = vmatpush1.msra.mxu0 0.0
    %889 = vmatprep.subr.mxu0 0.0
    %890 = vmatpush1.msra.mxu0 0.0
    %891 = vmatprep.subr.mxu0 0.0
    %892 = vmatpush1.msra.mxu0 0.0
    %893 = vmatprep.subr.mxu0 0.0
    %894 = vmatpush1.msra.mxu0 0.0
    %895 = vmatprep.subr.mxu0 0.0
    %896 = vmatpush1.msra.mxu0 0.0
    %897 = vmatprep.subr.mxu0 0.0
    %898 = vmatpush1.msra.mxu0 0.0
    %899 = vmatprep.mubr.f32.mxu0 0.0
    %900 = vmatmul.mubr.f32.gmra.mrb[0].mxu0 %v833
    %v901 = vpop.f32.mrb[0].mxu0
    %v902 = vadd.f32 0.0, %v901
    %v903 = vpop.f32.mrb[0].mxu0
    %904 = vdwg.mxu0
    %v905 = vadd.f32 %v325, %v902
    %v906 = vxor.u32 %v905, 2147483648
    %v907 = vmul.f32 %v906, 1.442695
    %v908 = vpow.pop %v907
    %v909 = vadd.f32 %v908, 1.0
    %v910 = vrcp.pop %v909
    %v911 = vmul.f32 1.0, %v910
    %v912 = vtanh.pop %v905
    %v913 = vmul.f32 %v911, %v823
    %915 = vrot.lane.b32.xlu0 %v912, 32
    %v916 = vpop.permute.xlu0 %915
    %v918 = vmul.f32 %v911, %v916
    %920 = vrot.lane.b32.xlu0 %v918, 32
    %v921 = vpop.permute.xlu0 %920
    %v923 = vadd.f32 %v913, %v921
    %v924 = vtanh.pop %v923
    %926 = vrot.lane.b32.xlu0 %v924, 32
    %v927 = vpop.permute.xlu0 %926
    %v929 = vmul.f32 %v911, %v927
    %931 = vrot.lane.b32.xlu0 %v929, 64
    %v932 = vpop.permute.xlu0 %931
    %v933 = vsel %vm101, %v932, 0
    %935 = vmatprep.subr.mxu0 0.0
    %936 = vmatpush1.msra.mxu0 %v328
    %937 = vmatprep.subr.mxu0 0.0
    %938 = vmatpush1.msra.mxu0 %v329
    %939 = vmatprep.subr.mxu0 0.0
    %940 = vmatpush1.msra.mxu0 %v330
    %941 = vmatprep.subr.mxu0 0.0
    %942 = vmatpush1.msra.mxu0 %v331
    %943 = vmatprep.subr.mxu0 0.0
    %944 = vmatpush1.msra.mxu0 0.0
    %945 = vmatprep.subr.mxu0 0.0
    %946 = vmatpush1.msra.mxu0 0.0
    %947 = vmatprep.subr.mxu0 0.0
    %948 = vmatpush1.msra.mxu0 0.0
    %949 = vmatprep.subr.mxu0 0.0
    %950 = vmatpush1.msra.mxu0 0.0
    %951 = vmatprep.subr.mxu0 0.0
    %952 = vmatpush1.msra.mxu0 0.0
    %953 = vmatprep.subr.mxu0 0.0
    %954 = vmatpush1.msra.mxu0 0.0
    %955 = vmatprep.subr.mxu0 0.0
    %956 = vmatpush1.msra.mxu0 0.0
    %957 = vmatprep.subr.mxu0 0.0
    %958 = vmatpush1.msra.mxu0 0.0
    %959 = vmatprep.subr.mxu0 0.0
    %960 = vmatpush1.msra.mxu0 0.0
    %961 = vmatprep.subr.mxu0 0.0
    %962 = vmatpush1.msra.mxu0 0.0
    %963 = vmatprep.subr.mxu0 0.0
    %964 = vmatpush1.msra.mxu0 0.0
    %965 = vmatprep.subr.mxu0 0.0
    %966 = vmatpush1.msra.mxu0 0.0
    %967 = vmatprep.subr.mxu0 0.0
    %968 = vmatpush1.msra.mxu0 0.0
    %969 = vmatprep.subr.mxu0 0.0
    %970 = vmatpush1.msra.mxu0 0.0
    %971 = vmatprep.subr.mxu0 0.0
    %972 = vmatpush1.msra.mxu0 0.0
    %973 = vmatprep.subr.mxu0 0.0
    %974 = vmatpush1.msra.mxu0 0.0
    %975 = vmatprep.subr.mxu0 0.0
    %976 = vmatpush1.msra.mxu0 0.0
    %977 = vmatprep.subr.mxu0 0.0
    %978 = vmatpush1.msra.mxu0 0.0
    %979 = vmatprep.subr.mxu0 0.0
    %980 = vmatpush1.msra.mxu0 0.0
    %981 = vmatprep.subr.mxu0 0.0
    %982 = vmatpush1.msra.mxu0 0.0
    %983 = vmatprep.subr.mxu0 0.0
    %984 = vmatpush1.msra.mxu0 0.0
    %985 = vmatprep.subr.mxu0 0.0
    %986 = vmatpush1.msra.mxu0 0.0
    %987 = vmatprep.subr.mxu0 0.0
    %988 = vmatpush1.msra.mxu0 0.0
    %989 = vmatprep.subr.mxu0 0.0
    %990 = vmatpush1.msra.mxu0 0.0
    %991 = vmatprep.subr.mxu0 0.0
    %992 = vmatpush1.msra.mxu0 0.0
    %993 = vmatprep.subr.mxu0 0.0
    %994 = vmatpush1.msra.mxu0 0.0
    %995 = vmatprep.subr.mxu0 0.0
    %996 = vmatpush1.msra.mxu0 0.0
    %997 = vmatprep.subr.mxu0 0.0
    %998 = vmatpush1.msra.mxu0 0.0
    %999 = vmatprep.mubr.f32.mxu0 0.0
    %1000 = vmatmul.mubr.f32.gmra.mrb[0].mxu0 %v933
    %v1001 = vpop.f32.mrb[0].mxu0
    %v1002 = vadd.f32 0.0, %v1001
    %v1003 = vpop.f32.mrb[0].mxu0
    %1004 = vdwg.mxu0
    %v1005 = vadd.f32 %v326, %v1002
    %v1006 = vxor.u32 %v1005, 2147483648
    %v1007 = vmul.f32 %v1006, 1.442695
    %v1008 = vpow.pop %v1007
    %v1009 = vadd.f32 %v1008, 1.0
    %v1010 = vrcp.pop %v1009
    %v1011 = vmul.f32 1.0, %v1010
    %v1012 = vtanh.pop %v1005
    %v1013 = vmul.f32 %v1011, %v923
    %1015 = vrot.lane.b32.xlu0 %v1012, 32
    %v1016 = vpop.permute.xlu0 %1015
    %v1018 = vmul.f32 %v1011, %v1016
    %1020 = vrot.lane.b32.xlu0 %v1018, 32
    %v1021 = vpop.permute.xlu0 %1020
    %v1023 = vadd.f32 %v1013, %v1021
    %v1024 = vtanh.pop %v1023
    %1026 = vrot.lane.b32.xlu0 %v1024, 32
    %v1027 = vpop.permute.xlu0 %1026
    %v1029 = vmul.f32 %v1011, %v1027
    %1031 = vrot.lane.b32.xlu0 %v1029, 64
    %v1032 = vpop.permute.xlu0 %1031
    %v1033 = vsel %vm101, %v1032, 0
    %1035 = vmatprep.subr.mxu0 0.0
    %1036 = vmatpush1.msra.mxu0 %v328
    %1037 = vmatprep.subr.mxu0 0.0
    %1038 = vmatpush1.msra.mxu0 %v329
    %1039 = vmatprep.subr.mxu0 0.0
    %1040 = vmatpush1.msra.mxu0 %v330
    %1041 = vmatprep.subr.mxu0 0.0
    %1042 = vmatpush1.msra.mxu0 %v331
    %1043 = vmatprep.subr.mxu0 0.0
    %1044 = vmatpush1.msra.mxu0 0.0
    %1045 = vmatprep.subr.mxu0 0.0
    %1046 = vmatpush1.msra.mxu0 0.0
    %1047 = vmatprep.subr.mxu0 0.0
    %1048 = vmatpush1.msra.mxu0 0.0
    %1049 = vmatprep.subr.mxu0 0.0
    %1050 = vmatpush1.msra.mxu0 0.0
    %1051 = vmatprep.subr.mxu0 0.0
    %1052 = vmatpush1.msra.mxu0 0.0
    %1053 = vmatprep.subr.mxu0 0.0
    %1054 = vmatpush1.msra.mxu0 0.0
    %1055 = vmatprep.subr.mxu0 0.0
    %1056 = vmatpush1.msra.mxu0 0.0
    %1057 = vmatprep.subr.mxu0 0.0
    %1058 = vmatpush1.msra.mxu0 0.0
    %1059 = vmatprep.subr.mxu0 0.0
    %1060 = vmatpush1.msra.mxu0 0.0
    %1061 = vmatprep.subr.mxu0 0.0
    %1062 = vmatpush1.msra.mxu0 0.0
    %1063 = vmatprep.subr.mxu0 0.0
    %1064 = vmatpush1.msra.mxu0 0.0
    %1065 = vmatprep.subr.mxu0 0.0
    %1066 = vmatpush1.msra.mxu0 0.0
    %1067 = vmatprep.subr.mxu0 0.0
    %1068 = vmatpush1.msra.mxu0 0.0
    %1069 = vmatprep.subr.mxu0 0.0
    %1070 = vmatpush1.msra.mxu0 0.0
    %1071 = vmatprep.subr.mxu0 0.0
    %1072 = vmatpush1.msra.mxu0 0.0
    %1073 = vmatprep.subr.mxu0 0.0
    %1074 = vmatpush1.msra.mxu0 0.0
    %1075 = vmatprep.subr.mxu0 0.0
    %1076 = vmatpush1.msra.mxu0 0.0
    %1077 = vmatprep.subr.mxu0 0.0
    %1078 = vmatpush1.msra.mxu0 0.0
    %1079 = vmatprep.subr.mxu0 0.0
    %1080 = vmatpush1.msra.mxu0 0.0
    %1081 = vmatprep.subr.mxu0 0.0
    %1082 = vmatpush1.msra.mxu0 0.0
    %1083 = vmatprep.subr.mxu0 0.0
    %1084 = vmatpush1.msra.mxu0 0.0
    %1085 = vmatprep.subr.mxu0 0.0
    %1086 = vmatpush1.msra.mxu0 0.0
    %1087 = vmatprep.subr.mxu0 0.0
    %1088 = vmatpush1.msra.mxu0 0.0
    %1089 = vmatprep.subr.mxu0 0.0
    %1090 = vmatpush1.msra.mxu0 0.0
    %1091 = vmatprep.subr.mxu0 0.0
    %1092 = vmatpush1.msra.mxu0 0.0
    %1093 = vmatprep.subr.mxu0 0.0
    %1094 = vmatpush1.msra.mxu0 0.0
    %1095 = vmatprep.subr.mxu0 0.0
    %1096 = vmatpush1.msra.mxu0 0.0
    %1097 = vmatprep.subr.mxu0 0.0
    %1098 = vmatpush1.msra.mxu0 0.0
    %1099 = vmatprep.mubr.f32.mxu0 0.0
    %1100 = vmatmul.mubr.f32.gmra.mrb[0].mxu0 %v1033
    %v1101 = vpop.f32.mrb[0].mxu0
    %v1102 = vadd.f32 0.0, %v1101
    %v1103 = vpop.f32.mrb[0].mxu0
    %1104 = vdwg.mxu0
    %v1105 = vadd.f32 %v327, %v1102
    %v1106 = vxor.u32 %v1105, 2147483648
    %v1107 = vmul.f32 %v1106, 1.442695
    %v1108 = vpow.pop %v1107
    %v1109 = vadd.f32 %v1108, 1.0
    %v1110 = vrcp.pop %v1109
    %v1111 = vmul.f32 1.0, %v1110
    %v1112 = vtanh.pop %v1105
    %v1113 = vmul.f32 %v1111, %v1023
    %1115 = vrot.lane.b32.xlu0 %v1112, 32
    %v1116 = vpop.permute.xlu0 %1115
    %v1118 = vmul.f32 %v1111, %v1116
    %1120 = vrot.lane.b32.xlu0 %v1118, 32
    %v1121 = vpop.permute.xlu0 %1120
    %v1123 = vadd.f32 %v1113, %v1121
    %v1124 = vtanh.pop %v1123
    %1126 = vrot.lane.b32.xlu0 %v1124, 32
    %v1127 = vpop.permute.xlu0 %1126
    %v1129 = vmul.f32 %v1111, %v1127
    %v1130 = vld [vmem:[#allocation7] sm:$0xff]
    %v1131 = vld [vmem:[#allocation7 + $0x8] sm:$0xff]
    %v1132 = vld [vmem:[#allocation7 + $0x10] sm:$0xff]
    %v1133 = vld [vmem:[#allocation7 + $0x18] sm:$0xff]
    %v1134 = vsel %vm284, 1, 0
    %vm1135 = vcmp.eq.s32.totalorder %v1134, 1
    %1138 = vrot.lane.b32.xlu0 %v1129, 64
    %v1139 = vpop.permute.xlu0 %1138
    %v1141 = vsel %vm1135, %v432, %v1139
    %v1144 = vrot.slane %v266, 7
    %v1145 = vsel %vm290, %v1144, %v261
    %v1148 = vsel %vm101, %v1141, 0
    %1150 = vmatprep.subr.mxu0 0.0
    %1151 = vmatpush1.msra.mxu0 %v1130
    %1152 = vmatprep.subr.mxu0 0.0
    %1153 = vmatpush1.msra.mxu0 %v1131
    %1154 = vmatprep.subr.mxu0 0.0
    %1155 = vmatpush1.msra.mxu0 %v1132
    %1156 = vmatprep.subr.mxu0 0.0
    %1157 = vmatpush1.msra.mxu0 %v1133
    %1158 = vmatprep.subr.mxu0 0.0
    %1159 = vmatpush1.msra.mxu0 0.0
    %1160 = vmatprep.subr.mxu0 0.0
    %1161 = vmatpush1.msra.mxu0 0.0
    %1162 = vmatprep.subr.mxu0 0.0
    %1163 = vmatpush1.msra.mxu0 0.0
    %1164 = vmatprep.subr.mxu0 0.0
    %1165 = vmatpush1.msra.mxu0 0.0
    %1166 = vmatprep.subr.mxu0 0.0
    %1167 = vmatpush1.msra.mxu0 0.0
    %1168 = vmatprep.subr.mxu0 0.0
    %1169 = vmatpush1.msra.mxu0 0.0
    %1170 = vmatprep.subr.mxu0 0.0
    %1171 = vmatpush1.msra.mxu0 0.0
    %1172 = vmatprep.subr.mxu0 0.0
    %1173 = vmatpush1.msra.mxu0 0.0
    %1174 = vmatprep.subr.mxu0 0.0
    %1175 = vmatpush1.msra.mxu0 0.0
    %1176 = vmatprep.subr.mxu0 0.0
    %1177 = vmatpush1.msra.mxu0 0.0
    %1178 = vmatprep.subr.mxu0 0.0
    %1179 = vmatpush1.msra.mxu0 0.0
    %1180 = vmatprep.subr.mxu0 0.0
    %1181 = vmatpush1.msra.mxu0 0.0
    %1182 = vmatprep.subr.mxu0 0.0
    %1183 = vmatpush1.msra.mxu0 0.0
    %1184 = vmatprep.subr.mxu0 0.0
    %1185 = vmatpush1.msra.mxu0 0.0
    %1186 = vmatprep.subr.mxu0 0.0
    %1187 = vmatpush1.msra.mxu0 0.0
    %1188 = vmatprep.subr.mxu0 0.0
    %1189 = vmatpush1.msra.mxu0 0.0
    %1190 = vmatprep.subr.mxu0 0.0
    %1191 = vmatpush1.msra.mxu0 0.0
    %1192 = vmatprep.subr.mxu0 0.0
    %1193 = vmatpush1.msra.mxu0 0.0
    %1194 = vmatprep.subr.mxu0 0.0
    %1195 = vmatpush1.msra.mxu0 0.0
    %1196 = vmatprep.subr.mxu0 0.0
    %1197 = vmatpush1.msra.mxu0 0.0
    %1198 = vmatprep.subr.mxu0 0.0
    %1199 = vmatpush1.msra.mxu0 0.0
    %1200 = vmatprep.subr.mxu0 0.0
    %1201 = vmatpush1.msra.mxu0 0.0
    %1202 = vmatprep.subr.mxu0 0.0
    %1203 = vmatpush1.msra.mxu0 0.0
    %1204 = vmatprep.subr.mxu0 0.0
    %1205 = vmatpush1.msra.mxu0 0.0
    %1206 = vmatprep.subr.mxu0 0.0
    %1207 = vmatpush1.msra.mxu0 0.0
    %1208 = vmatprep.subr.mxu0 0.0
    %1209 = vmatpush1.msra.mxu0 0.0
    %1210 = vmatprep.subr.mxu0 0.0
    %1211 = vmatpush1.msra.mxu0 0.0
    %1212 = vmatprep.subr.mxu0 0.0
    %1213 = vmatpush1.msra.mxu0 0.0
    %1214 = vmatprep.mubr.f32.mxu0 0.0
    %1215 = vmatmul.mubr.f32.gmra.mrb[0].mxu0 %v1148
    %v1216 = vpop.f32.mrb[0].mxu0
    %v1217 = vadd.f32 %v1145, %v1216
    %v1218 = vpop.f32.mrb[0].mxu0
    %1219 = vdwg.mxu0
    %v1220 = vtanh.pop %v1217
    %v1223 = vsel %vm1135, %v532, %v1032
    %v1224 = vrot.slane %v261, 1
    %v1225 = vsel %vm290, %v266, %v1224
    %v1228 = vsel %vm101, %v1223, 0
    %1230 = vmatprep.subr.mxu0 0.0
    %1231 = vmatpush1.msra.mxu0 %v1130
    %1232 = vmatprep.subr.mxu0 0.0
    %1233 = vmatpush1.msra.mxu0 %v1131
    %1234 = vmatprep.subr.mxu0 0.0
    %1235 = vmatpush1.msra.mxu0 %v1132
    %1236 = vmatprep.subr.mxu0 0.0
    %1237 = vmatpush1.msra.mxu0 %v1133
    %1238 = vmatprep.subr.mxu0 0.0
    %1239 = vmatpush1.msra.mxu0 0.0
    %1240 = vmatprep.subr.mxu0 0.0
    %1241 = vmatpush1.msra.mxu0 0.0
    %1242 = vmatprep.subr.mxu0 0.0
    %1243 = vmatpush1.msra.mxu0 0.0
    %1244 = vmatprep.subr.mxu0 0.0
    %1245 = vmatpush1.msra.mxu0 0.0
    %1246 = vmatprep.subr.mxu0 0.0
    %1247 = vmatpush1.msra.mxu0 0.0
    %1248 = vmatprep.subr.mxu0 0.0
    %1249 = vmatpush1.msra.mxu0 0.0
    %1250 = vmatprep.subr.mxu0 0.0
    %1251 = vmatpush1.msra.mxu0 0.0
    %1252 = vmatprep.subr.mxu0 0.0
    %1253 = vmatpush1.msra.mxu0 0.0
    %1254 = vmatprep.subr.mxu0 0.0
    %1255 = vmatpush1.msra.mxu0 0.0
    %1256 = vmatprep.subr.mxu0 0.0
    %1257 = vmatpush1.msra.mxu0 0.0
    %1258 = vmatprep.subr.mxu0 0.0
    %1259 = vmatpush1.msra.mxu0 0.0
    %1260 = vmatprep.subr.mxu0 0.0
    %1261 = vmatpush1.msra.mxu0 0.0
    %1262 = vmatprep.subr.mxu0 0.0
    %1263 = vmatpush1.msra.mxu0 0.0
    %1264 = vmatprep.subr.mxu0 0.0
    %1265 = vmatpush1.msra.mxu0 0.0
    %1266 = vmatprep.subr.mxu0 0.0
    %1267 = vmatpush1.msra.mxu0 0.0
    %1268 = vmatprep.subr.mxu0 0.0
    %1269 = vmatpush1.msra.mxu0 0.0
    %1270 = vmatprep.subr.mxu0 0.0
    %1271 = vmatpush1.msra.mxu0 0.0
    %1272 = vmatprep.subr.mxu0 0.0
    %1273 = vmatpush1.msra.mxu0 0.0
    %1274 = vmatprep.subr.mxu0 0.0
    %1275 = vmatpush1.msra.mxu0 0.0
    %1276 = vmatprep.subr.mxu0 0.0
    %1277 = vmatpush1.msra.mxu0 0.0
    %1278 = vmatprep.subr.mxu0 0.0
    %1279 = vmatpush1.msra.mxu0 0.0
    %1280 = vmatprep.subr.mxu0 0.0
    %1281 = vmatpush1.msra.mxu0 0.0
    %1282 = vmatprep.subr.mxu0 0.0
    %1283 = vmatpush1.msra.mxu0 0.0
    %1284 = vmatprep.subr.mxu0 0.0
    %1285 = vmatpush1.msra.mxu0 0.0
    %1286 = vmatprep.subr.mxu0 0.0
    %1287 = vmatpush1.msra.mxu0 0.0
    %1288 = vmatprep.subr.mxu0 0.0
    %1289 = vmatpush1.msra.mxu0 0.0
    %1290 = vmatprep.subr.mxu0 0.0
    %1291 = vmatpush1.msra.mxu0 0.0
    %1292 = vmatprep.subr.mxu0 0.0
    %1293 = vmatpush1.msra.mxu0 0.0
    %1294 = vmatprep.mubr.f32.mxu0 0.0
    %1295 = vmatmul.mubr.f32.gmra.mrb[0].mxu0 %v1228
    %v1296 = vpop.f32.mrb[0].mxu0
    %v1297 = vadd.f32 %v1225, %v1296
    %v1298 = vpop.f32.mrb[0].mxu0
    %1299 = vdwg.mxu0
    %v1300 = vtanh.pop %v1297
    %v1301 = vmax.f32 %v1220, %v1300
    %v1304 = vsel %vm1135, %v632, %v932
    %v1305 = vrot.slane %v261, 2
    %v1306 = vrot.slane %v266, 1
    %v1307 = vsel %vm290, %v1306, %v1305
    %v1310 = vsel %vm101, %v1304, 0
    %1312 = vmatprep.subr.mxu0 0.0
    %1313 = vmatpush1.msra.mxu0 %v1130
    %1314 = vmatprep.subr.mxu0 0.0
    %1315 = vmatpush1.msra.mxu0 %v1131
    %1316 = vmatprep.subr.mxu0 0.0
    %1317 = vmatpush1.msra.mxu0 %v1132
    %1318 = vmatprep.subr.mxu0 0.0
    %1319 = vmatpush1.msra.mxu0 %v1133
    %1320 = vmatprep.subr.mxu0 0.0
    %1321 = vmatpush1.msra.mxu0 0.0
    %1322 = vmatprep.subr.mxu0 0.0
    %1323 = vmatpush1.msra.mxu0 0.0
    %1324 = vmatprep.subr.mxu0 0.0
    %1325 = vmatpush1.msra.mxu0 0.0
    %1326 = vmatprep.subr.mxu0 0.0
    %1327 = vmatpush1.msra.mxu0 0.0
    %1328 = vmatprep.subr.mxu0 0.0
    %1329 = vmatpush1.msra.mxu0 0.0
    %1330 = vmatprep.subr.mxu0 0.0
    %1331 = vmatpush1.msra.mxu0 0.0
    %1332 = vmatprep.subr.mxu0 0.0
    %1333 = vmatpush1.msra.mxu0 0.0
    %1334 = vmatprep.subr.mxu0 0.0
    %1335 = vmatpush1.msra.mxu0 0.0
    %1336 = vmatprep.subr.mxu0 0.0
    %1337 = vmatpush1.msra.mxu0 0.0
    %1338 = vmatprep.subr.mxu0 0.0
    %1339 = vmatpush1.msra.mxu0 0.0
    %1340 = vmatprep.subr.mxu0 0.0
    %1341 = vmatpush1.msra.mxu0 0.0
    %1342 = vmatprep.subr.mxu0 0.0
    %1343 = vmatpush1.msra.mxu0 0.0
    %1344 = vmatprep.subr.mxu0 0.0
    %1345 = vmatpush1.msra.mxu0 0.0
    %1346 = vmatprep.subr.mxu0 0.0
    %1347 = vmatpush1.msra.mxu0 0.0
    %1348 = vmatprep.subr.mxu0 0.0
    %1349 = vmatpush1.msra.mxu0 0.0
    %1350 = vmatprep.subr.mxu0 0.0
    %1351 = vmatpush1.msra.mxu0 0.0
    %1352 = vmatprep.subr.mxu0 0.0
    %1353 = vmatpush1.msra.mxu0 0.0
    %1354 = vmatprep.subr.mxu0 0.0
    %1355 = vmatpush1.msra.mxu0 0.0
    %1356 = vmatprep.subr.mxu0 0.0
    %1357 = vmatpush1.msra.mxu0 0.0
    %1358 = vmatprep.subr.mxu0 0.0
    %1359 = vmatpush1.msra.mxu0 0.0
    %1360 = vmatprep.subr.mxu0 0.0
    %1361 = vmatpush1.msra.mxu0 0.0
    %1362 = vmatprep.subr.mxu0 0.0
    %1363 = vmatpush1.msra.mxu0 0.0
    %1364 = vmatprep.subr.mxu0 0.0
    %1365 = vmatpush1.msra.mxu0 0.0
    %1366 = vmatprep.subr.mxu0 0.0
    %1367 = vmatpush1.msra.mxu0 0.0
    %1368 = vmatprep.subr.mxu0 0.0
    %1369 = vmatpush1.msra.mxu0 0.0
    %1370 = vmatprep.subr.mxu0 0.0
    %1371 = vmatpush1.msra.mxu0 0.0
    %1372 = vmatprep.subr.mxu0 0.0
    %1373 = vmatpush1.msra.mxu0 0.0
    %1374 = vmatprep.subr.mxu0 0.0
    %1375 = vmatpush1.msra.mxu0 0.0
    %1376 = vmatprep.mubr.f32.mxu0 0.0
    %1377 = vmatmul.mubr.f32.gmra.mrb[0].mxu0 %v1310
    %v1378 = vpop.f32.mrb[0].mxu0
    %v1379 = vadd.f32 %v1307, %v1378
    %v1380 = vpop.f32.mrb[0].mxu0
    %1381 = vdwg.mxu0
    %v1382 = vtanh.pop %v1379
    %v1383 = vmax.f32 %v1301, %v1382
    %v1386 = vsel %vm1135, %v732, %v832
    %v1387 = vrot.slane %v261, 3
    %v1388 = vrot.slane %v266, 2
    %v1389 = vsel %vm290, %v1388, %v1387
    %v1392 = vsel %vm101, %v1386, 0
    %1394 = vmatprep.subr.mxu0 0.0
    %1395 = vmatpush1.msra.mxu0 %v1130
    %1396 = vmatprep.subr.mxu0 0.0
    %1397 = vmatpush1.msra.mxu0 %v1131
    %1398 = vmatprep.subr.mxu0 0.0
    %1399 = vmatpush1.msra.mxu0 %v1132
    %1400 = vmatprep.subr.mxu0 0.0
    %1401 = vmatpush1.msra.mxu0 %v1133
    %1402 = vmatprep.subr.mxu0 0.0
    %1403 = vmatpush1.msra.mxu0 0.0
    %1404 = vmatprep.subr.mxu0 0.0
    %1405 = vmatpush1.msra.mxu0 0.0
    %1406 = vmatprep.subr.mxu0 0.0
    %1407 = vmatpush1.msra.mxu0 0.0
    %1408 = vmatprep.subr.mxu0 0.0
    %1409 = vmatpush1.msra.mxu0 0.0
    %1410 = vmatprep.subr.mxu0 0.0
    %1411 = vmatpush1.msra.mxu0 0.0
    %1412 = vmatprep.subr.mxu0 0.0
    %1413 = vmatpush1.msra.mxu0 0.0
    %1414 = vmatprep.subr.mxu0 0.0
    %1415 = vmatpush1.msra.mxu0 0.0
    %1416 = vmatprep.subr.mxu0 0.0
    %1417 = vmatpush1.msra.mxu0 0.0
    %1418 = vmatprep.subr.mxu0 0.0
    %1419 = vmatpush1.msra.mxu0 0.0
    %1420 = vmatprep.subr.mxu0 0.0
    %1421 = vmatpush1.msra.mxu0 0.0
    %1422 = vmatprep.subr.mxu0 0.0
    %1423 = vmatpush1.msra.mxu0 0.0
    %1424 = vmatprep.subr.mxu0 0.0
    %1425 = vmatpush1.msra.mxu0 0.0
    %1426 = vmatprep.subr.mxu0 0.0
    %1427 = vmatpush1.msra.mxu0 0.0
    %1428 = vmatprep.subr.mxu0 0.0
    %1429 = vmatpush1.msra.mxu0 0.0
    %1430 = vmatprep.subr.mxu0 0.0
    %1431 = vmatpush1.msra.mxu0 0.0
    %1432 = vmatprep.subr.mxu0 0.0
    %1433 = vmatpush1.msra.mxu0 0.0
    %1434 = vmatprep.subr.mxu0 0.0
    %1435 = vmatpush1.msra.mxu0 0.0
    %1436 = vmatprep.subr.mxu0 0.0
    %1437 = vmatpush1.msra.mxu0 0.0
    %1438 = vmatprep.subr.mxu0 0.0
    %1439 = vmatpush1.msra.mxu0 0.0
    %1440 = vmatprep.subr.mxu0 0.0
    %1441 = vmatpush1.msra.mxu0 0.0
    %1442 = vmatprep.subr.mxu0 0.0
    %1443 = vmatpush1.msra.mxu0 0.0
    %1444 = vmatprep.subr.mxu0 0.0
    %1445 = vmatpush1.msra.mxu0 0.0
    %1446 = vmatprep.subr.mxu0 0.0
    %1447 = vmatpush1.msra.mxu0 0.0
    %1448 = vmatprep.subr.mxu0 0.0
    %1449 = vmatpush1.msra.mxu0 0.0
    %1450 = vmatprep.subr.mxu0 0.0
    %1451 = vmatpush1.msra.mxu0 0.0
    %1452 = vmatprep.subr.mxu0 0.0
    %1453 = vmatpush1.msra.mxu0 0.0
    %1454 = vmatprep.subr.mxu0 0.0
    %1455 = vmatpush1.msra.mxu0 0.0
    %1456 = vmatprep.subr.mxu0 0.0
    %1457 = vmatpush1.msra.mxu0 0.0
    %1458 = vmatprep.mubr.f32.mxu0 0.0
    %1459 = vmatmul.mubr.f32.gmra.mrb[0].mxu0 %v1392
    %v1460 = vpop.f32.mrb[0].mxu0
    %v1461 = vadd.f32 %v1389, %v1460
    %v1462 = vpop.f32.mrb[0].mxu0
    %1463 = vdwg.mxu0
    %v1464 = vtanh.pop %v1461
    %v1465 = vmax.f32 %v1383, %v1464
    %v1466 = vsel %vm1135, %v832, %v732
    %v1467 = vrot.slane %v261, 4
    %v1468 = vrot.slane %v266, 3
    %v1469 = vsel %vm290, %v1468, %v1467
    %v1472 = vsel %vm101, %v1466, 0
    %1474 = vmatprep.subr.mxu0 0.0
    %1475 = vmatpush1.msra.mxu0 %v1130
    %1476 = vmatprep.subr.mxu0 0.0
    %1477 = vmatpush1.msra.mxu0 %v1131
    %1478 = vmatprep.subr.mxu0 0.0
    %1479 = vmatpush1.msra.mxu0 %v1132
    %1480 = vmatprep.subr.mxu0 0.0
    %1481 = vmatpush1.msra.mxu0 %v1133
    %1482 = vmatprep.subr.mxu0 0.0
    %1483 = vmatpush1.msra.mxu0 0.0
    %1484 = vmatprep.subr.mxu0 0.0
    %1485 = vmatpush1.msra.mxu0 0.0
    %1486 = vmatprep.subr.mxu0 0.0
    %1487 = vmatpush1.msra.mxu0 0.0
    %1488 = vmatprep.subr.mxu0 0.0
    %1489 = vmatpush1.msra.mxu0 0.0
    %1490 = vmatprep.subr.mxu0 0.0
    %1491 = vmatpush1.msra.mxu0 0.0
    %1492 = vmatprep.subr.mxu0 0.0
    %1493 = vmatpush1.msra.mxu0 0.0
    %1494 = vmatprep.subr.mxu0 0.0
    %1495 = vmatpush1.msra.mxu0 0.0
    %1496 = vmatprep.subr.mxu0 0.0
    %1497 = vmatpush1.msra.mxu0 0.0
    %1498 = vmatprep.subr.mxu0 0.0
    %1499 = vmatpush1.msra.mxu0 0.0
    %1500 = vmatprep.subr.mxu0 0.0
    %1501 = vmatpush1.msra.mxu0 0.0
    %1502 = vmatprep.subr.mxu0 0.0
    %1503 = vmatpush1.msra.mxu0 0.0
    %1504 = vmatprep.subr.mxu0 0.0
    %1505 = vmatpush1.msra.mxu0 0.0
    %1506 = vmatprep.subr.mxu0 0.0
    %1507 = vmatpush1.msra.mxu0 0.0
    %1508 = vmatprep.subr.mxu0 0.0
    %1509 = vmatpush1.msra.mxu0 0.0
    %1510 = vmatprep.subr.mxu0 0.0
    %1511 = vmatpush1.msra.mxu0 0.0
    %1512 = vmatprep.subr.mxu0 0.0
    %1513 = vmatpush1.msra.mxu0 0.0
    %1514 = vmatprep.subr.mxu0 0.0
    %1515 = vmatpush1.msra.mxu0 0.0
    %1516 = vmatprep.subr.mxu0 0.0
    %1517 = vmatpush1.msra.mxu0 0.0
    %1518 = vmatprep.subr.mxu0 0.0
    %1519 = vmatpush1.msra.mxu0 0.0
    %1520 = vmatprep.subr.mxu0 0.0
    %1521 = vmatpush1.msra.mxu0 0.0
    %1522 = vmatprep.subr.mxu0 0.0
    %1523 = vmatpush1.msra.mxu0 0.0
    %1524 = vmatprep.subr.mxu0 0.0
    %1525 = vmatpush1.msra.mxu0 0.0
    %1526 = vmatprep.subr.mxu0 0.0
    %1527 = vmatpush1.msra.mxu0 0.0
    %1528 = vmatprep.subr.mxu0 0.0
    %1529 = vmatpush1.msra.mxu0 0.0
    %1530 = vmatprep.subr.mxu0 0.0
    %1531 = vmatpush1.msra.mxu0 0.0
    %1532 = vmatprep.subr.mxu0 0.0
    %1533 = vmatpush1.msra.mxu0 0.0
    %1534 = vmatprep.subr.mxu0 0.0
    %1535 = vmatpush1.msra.mxu0 0.0
    %1536 = vmatprep.subr.mxu0 0.0
    %1537 = vmatpush1.msra.mxu0 0.0
    %1538 = vmatprep.mubr.f32.mxu0 0.0
    %1539 = vmatmul.mubr.f32.gmra.mrb[0].mxu0 %v1472
    %v1540 = vpop.f32.mrb[0].mxu0
    %v1541 = vadd.f32 %v1469, %v1540
    %v1542 = vpop.f32.mrb[0].mxu0
    %1543 = vdwg.mxu0
    %v1544 = vtanh.pop %v1541
    %v1545 = vmax.f32 %v1465, %v1544
    %v1546 = vsel %vm1135, %v932, %v632
    %v1547 = vrot.slane %v261, 5
    %v1548 = vrot.slane %v266, 4
    %v1549 = vsel %vm290, %v1548, %v1547
    %v1552 = vsel %vm101, %v1546, 0
    %1554 = vmatprep.subr.mxu0 0.0
    %1555 = vmatpush1.msra.mxu0 %v1130
    %1556 = vmatprep.subr.mxu0 0.0
    %1557 = vmatpush1.msra.mxu0 %v1131
    %1558 = vmatprep.subr.mxu0 0.0
    %1559 = vmatpush1.msra.mxu0 %v1132
    %1560 = vmatprep.subr.mxu0 0.0
    %1561 = vmatpush1.msra.mxu0 %v1133
    %1562 = vmatprep.subr.mxu0 0.0
    %1563 = vmatpush1.msra.mxu0 0.0
    %1564 = vmatprep.subr.mxu0 0.0
    %1565 = vmatpush1.msra.mxu0 0.0
    %1566 = vmatprep.subr.mxu0 0.0
    %1567 = vmatpush1.msra.mxu0 0.0
    %1568 = vmatprep.subr.mxu0 0.0
    %1569 = vmatpush1.msra.mxu0 0.0
    %1570 = vmatprep.subr.mxu0 0.0
    %1571 = vmatpush1.msra.mxu0 0.0
    %1572 = vmatprep.subr.mxu0 0.0
    %1573 = vmatpush1.msra.mxu0 0.0
    %1574 = vmatprep.subr.mxu0 0.0
    %1575 = vmatpush1.msra.mxu0 0.0
    %1576 = vmatprep.subr.mxu0 0.0
    %1577 = vmatpush1.msra.mxu0 0.0
    %1578 = vmatprep.subr.mxu0 0.0
    %1579 = vmatpush1.msra.mxu0 0.0
    %1580 = vmatprep.subr.mxu0 0.0
    %1581 = vmatpush1.msra.mxu0 0.0
    %1582 = vmatprep.subr.mxu0 0.0
    %1583 = vmatpush1.msra.mxu0 0.0
    %1584 = vmatprep.subr.mxu0 0.0
    %1585 = vmatpush1.msra.mxu0 0.0
    %1586 = vmatprep.subr.mxu0 0.0
    %1587 = vmatpush1.msra.mxu0 0.0
    %1588 = vmatprep.subr.mxu0 0.0
    %1589 = vmatpush1.msra.mxu0 0.0
    %1590 = vmatprep.subr.mxu0 0.0
    %1591 = vmatpush1.msra.mxu0 0.0
    %1592 = vmatprep.subr.mxu0 0.0
    %1593 = vmatpush1.msra.mxu0 0.0
    %1594 = vmatprep.subr.mxu0 0.0
    %1595 = vmatpush1.msra.mxu0 0.0
    %1596 = vmatprep.subr.mxu0 0.0
    %1597 = vmatpush1.msra.mxu0 0.0
    %1598 = vmatprep.subr.mxu0 0.0
    %1599 = vmatpush1.msra.mxu0 0.0
    %1600 = vmatprep.subr.mxu0 0.0
    %1601 = vmatpush1.msra.mxu0 0.0
    %1602 = vmatprep.subr.mxu0 0.0
    %1603 = vmatpush1.msra.mxu0 0.0
    %1604 = vmatprep.subr.mxu0 0.0
    %1605 = vmatpush1.msra.mxu0 0.0
    %1606 = vmatprep.subr.mxu0 0.0
    %1607 = vmatpush1.msra.mxu0 0.0
    %1608 = vmatprep.subr.mxu0 0.0
    %1609 = vmatpush1.msra.mxu0 0.0
    %1610 = vmatprep.subr.mxu0 0.0
    %1611 = vmatpush1.msra.mxu0 0.0
    %1612 = vmatprep.subr.mxu0 0.0
    %1613 = vmatpush1.msra.mxu0 0.0
    %1614 = vmatprep.subr.mxu0 0.0
    %1615 = vmatpush1.msra.mxu0 0.0
    %1616 = vmatprep.subr.mxu0 0.0
    %1617 = vmatpush1.msra.mxu0 0.0
    %1618 = vmatprep.mubr.f32.mxu0 0.0
    %1619 = vmatmul.mubr.f32.gmra.mrb[0].mxu0 %v1552
    %v1620 = vpop.f32.mrb[0].mxu0
    %v1621 = vadd.f32 %v1549, %v1620
    %v1622 = vpop.f32.mrb[0].mxu0
    %1623 = vdwg.mxu0
    %v1624 = vtanh.pop %v1621
    %v1625 = vmax.f32 %v1545, %v1624
    %v1626 = vsel %vm1135, %v1032, %v532
    %v1627 = vrot.slane %v261, 6
    %v1628 = vrot.slane %v266, 5
    %v1629 = vsel %vm290, %v1628, %v1627
    %v1632 = vsel %vm101, %v1626, 0
    %1634 = vmatprep.subr.mxu0 0.0
    %1635 = vmatpush1.msra.mxu0 %v1130
    %1636 = vmatprep.subr.mxu0 0.0
    %1637 = vmatpush1.msra.mxu0 %v1131
    %1638 = vmatprep.subr.mxu0 0.0
    %1639 = vmatpush1.msra.mxu0 %v1132
    %1640 = vmatprep.subr.mxu0 0.0
    %1641 = vmatpush1.msra.mxu0 %v1133
    %1642 = vmatprep.subr.mxu0 0.0
    %1643 = vmatpush1.msra.mxu0 0.0
    %1644 = vmatprep.subr.mxu0 0.0
    %1645 = vmatpush1.msra.mxu0 0.0
    %1646 = vmatprep.subr.mxu0 0.0
    %1647 = vmatpush1.msra.mxu0 0.0
    %1648 = vmatprep.subr.mxu0 0.0
    %1649 = vmatpush1.msra.mxu0 0.0
    %1650 = vmatprep.subr.mxu0 0.0
    %1651 = vmatpush1.msra.mxu0 0.0
    %1652 = vmatprep.subr.mxu0 0.0
    %1653 = vmatpush1.msra.mxu0 0.0
    %1654 = vmatprep.subr.mxu0 0.0
    %1655 = vmatpush1.msra.mxu0 0.0
    %1656 = vmatprep.subr.mxu0 0.0
    %1657 = vmatpush1.msra.mxu0 0.0
    %1658 = vmatprep.subr.mxu0 0.0
    %1659 = vmatpush1.msra.mxu0 0.0
    %1660 = vmatprep.subr.mxu0 0.0
    %1661 = vmatpush1.msra.mxu0 0.0
    %1662 = vmatprep.subr.mxu0 0.0
    %1663 = vmatpush1.msra.mxu0 0.0
    %1664 = vmatprep.subr.mxu0 0.0
    %1665 = vmatpush1.msra.mxu0 0.0
    %1666 = vmatprep.subr.mxu0 0.0
    %1667 = vmatpush1.msra.mxu0 0.0
    %1668 = vmatprep.subr.mxu0 0.0
    %1669 = vmatpush1.msra.mxu0 0.0
    %1670 = vmatprep.subr.mxu0 0.0
    %1671 = vmatpush1.msra.mxu0 0.0
    %1672 = vmatprep.subr.mxu0 0.0
    %1673 = vmatpush1.msra.mxu0 0.0
    %1674 = vmatprep.subr.mxu0 0.0
    %1675 = vmatpush1.msra.mxu0 0.0
    %1676 = vmatprep.subr.mxu0 0.0
    %1677 = vmatpush1.msra.mxu0 0.0
    %1678 = vmatprep.subr.mxu0 0.0
    %1679 = vmatpush1.msra.mxu0 0.0
    %1680 = vmatprep.subr.mxu0 0.0
    %1681 = vmatpush1.msra.mxu0 0.0
    %1682 = vmatprep.subr.mxu0 0.0
    %1683 = vmatpush1.msra.mxu0 0.0
    %1684 = vmatprep.subr.mxu0 0.0
    %1685 = vmatpush1.msra.mxu0 0.0
    %1686 = vmatprep.subr.mxu0 0.0
    %1687 = vmatpush1.msra.mxu0 0.0
    %1688 = vmatprep.subr.mxu0 0.0
    %1689 = vmatpush1.msra.mxu0 0.0
    %1690 = vmatprep.subr.mxu0 0.0
    %1691 = vmatpush1.msra.mxu0 0.0
    %1692 = vmatprep.subr.mxu0 0.0
    %1693 = vmatpush1.msra.mxu0 0.0
    %1694 = vmatprep.subr.mxu0 0.0
    %1695 = vmatpush1.msra.mxu0 0.0
    %1696 = vmatprep.subr.mxu0 0.0
    %1697 = vmatpush1.msra.mxu0 0.0
    %1698 = vmatprep.mubr.f32.mxu0 0.0
    %1699 = vmatmul.mubr.f32.gmra.mrb[0].mxu0 %v1632
    %v1700 = vpop.f32.mrb[0].mxu0
    %v1701 = vadd.f32 %v1629, %v1700
    %v1702 = vpop.f32.mrb[0].mxu0
    %1703 = vdwg.mxu0
    %v1704 = vtanh.pop %v1701
    %v1705 = vmax.f32 %v1625, %v1704
    %v1706 = vsel %vm1135, %v1139, %v432
    %v1707 = vrot.slane %v261, 7
    %v1708 = vrot.slane %v266, 6
    %v1709 = vsel %vm290, %v1708, %v1707
    %v1712 = vsel %vm101, %v1706, 0
    %1714 = vmatprep.subr.mxu0 0.0
    %1715 = vmatpush1.msra.mxu0 %v1130
    %1716 = vmatprep.subr.mxu0 0.0
    %1717 = vmatpush1.msra.mxu0 %v1131
    %1718 = vmatprep.subr.mxu0 0.0
    %1719 = vmatpush1.msra.mxu0 %v1132
    %1720 = vmatprep.subr.mxu0 0.0
    %1721 = vmatpush1.msra.mxu0 %v1133
    %1722 = vmatprep.subr.mxu0 0.0
    %1723 = vmatpush1.msra.mxu0 0.0
    %1724 = vmatprep.subr.mxu0 0.0
    %1725 = vmatpush1.msra.mxu0 0.0
    %1726 = vmatprep.subr.mxu0 0.0
    %1727 = vmatpush1.msra.mxu0 0.0
    %1728 = vmatprep.subr.mxu0 0.0
    %1729 = vmatpush1.msra.mxu0 0.0
    %1730 = vmatprep.subr.mxu0 0.0
    %1731 = vmatpush1.msra.mxu0 0.0
    %1732 = vmatprep.subr.mxu0 0.0
    %1733 = vmatpush1.msra.mxu0 0.0
    %1734 = vmatprep.subr.mxu0 0.0
    %1735 = vmatpush1.msra.mxu0 0.0
    %1736 = vmatprep.subr.mxu0 0.0
    %1737 = vmatpush1.msra.mxu0 0.0
    %1738 = vmatprep.subr.mxu0 0.0
    %1739 = vmatpush1.msra.mxu0 0.0
    %1740 = vmatprep.subr.mxu0 0.0
    %1741 = vmatpush1.msra.mxu0 0.0
    %1742 = vmatprep.subr.mxu0 0.0
    %1743 = vmatpush1.msra.mxu0 0.0
    %1744 = vmatprep.subr.mxu0 0.0
    %1745 = vmatpush1.msra.mxu0 0.0
    %1746 = vmatprep.subr.mxu0 0.0
    %1747 = vmatpush1.msra.mxu0 0.0
    %1748 = vmatprep.subr.mxu0 0.0
    %1749 = vmatpush1.msra.mxu0 0.0
    %1750 = vmatprep.subr.mxu0 0.0
    %1751 = vmatpush1.msra.mxu0 0.0
    %1752 = vmatprep.subr.mxu0 0.0
    %1753 = vmatpush1.msra.mxu0 0.0
    %1754 = vmatprep.subr.mxu0 0.0
    %1755 = vmatpush1.msra.mxu0 0.0
    %1756 = vmatprep.subr.mxu0 0.0
    %1757 = vmatpush1.msra.mxu0 0.0
    %1758 = vmatprep.subr.mxu0 0.0
    %1759 = vmatpush1.msra.mxu0 0.0
    %1760 = vmatprep.subr.mxu0 0.0
    %1761 = vmatpush1.msra.mxu0 0.0
    %1762 = vmatprep.subr.mxu0 0.0
    %1763 = vmatpush1.msra.mxu0 0.0
    %1764 = vmatprep.subr.mxu0 0.0
    %1765 = vmatpush1.msra.mxu0 0.0
    %1766 = vmatprep.subr.mxu0 0.0
    %1767 = vmatpush1.msra.mxu0 0.0
    %1768 = vmatprep.subr.mxu0 0.0
    %1769 = vmatpush1.msra.mxu0 0.0
    %1770 = vmatprep.subr.mxu0 0.0
    %1771 = vmatpush1.msra.mxu0 0.0
    %1772 = vmatprep.subr.mxu0 0.0
    %1773 = vmatpush1.msra.mxu0 0.0
    %1774 = vmatprep.subr.mxu0 0.0
    %1775 = vmatpush1.msra.mxu0 0.0
    %1776 = vmatprep.subr.mxu0 0.0
    %1777 = vmatpush1.msra.mxu0 0.0
    %1778 = vmatprep.mubr.f32.mxu0 0.0
    %1779 = vmatmul.mubr.f32.gmra.mrb[0].mxu0 %v1712
    %v1780 = vpop.f32.mrb[0].mxu0
    %v1781 = vadd.f32 %v1709, %v1780
    %v1782 = vpop.f32.mrb[0].mxu0
    %1783 = vdwg.mxu0
    %v1784 = vtanh.pop %v1781
    %v1785 = vmax.f32 %v1705, %v1784
    %v1786 = vld [vmem:[%s7] sm:$0xff]
    %v1787 = vld [vmem:[%s7 + $0x8] sm:$0xff]
    %v1788 = vld [vmem:[%s7 + $0x10] sm:$0xff]
    %v1789 = vld [vmem:[%s7 + $0x18] sm:$0xff]
    %v1790 = vld [vmem:[%s8] sm:$0x1]
    %v1792 = vlaneseq
    %v1793 = vshrl.u32 %v1792, 7
    %v1794 = vsub.s32 0, %v1793
    %v1795 = vrot.slane %v1790, %v1794
    %v1798 = vsel %vm101, %v1785, 0
    %1800 = vmatprep.subr.mxu0 0.0
    %1801 = vmatpush1.msra.mxu0 %v1786
    %1802 = vmatprep.subr.mxu0 0.0
    %1803 = vmatpush1.msra.mxu0 %v1787
    %1804 = vmatprep.subr.mxu0 0.0
    %1805 = vmatpush1.msra.mxu0 %v1788
    %1806 = vmatprep.subr.mxu0 0.0
    %1807 = vmatpush1.msra.mxu0 %v1789
    %1808 = vmatprep.subr.mxu0 0.0
    %1809 = vmatpush1.msra.mxu0 0.0
    %1810 = vmatprep.subr.mxu0 0.0
    %1811 = vmatpush1.msra.mxu0 0.0
    %1812 = vmatprep.subr.mxu0 0.0
    %1813 = vmatpush1.msra.mxu0 0.0
    %1814 = vmatprep.subr.mxu0 0.0
    %1815 = vmatpush1.msra.mxu0 0.0
    %1816 = vmatprep.subr.mxu0 0.0
    %1817 = vmatpush1.msra.mxu0 0.0
    %1818 = vmatprep.subr.mxu0 0.0
    %1819 = vmatpush1.msra.mxu0 0.0
    %1820 = vmatprep.subr.mxu0 0.0
    %1821 = vmatpush1.msra.mxu0 0.0
    %1822 = vmatprep.subr.mxu0 0.0
    %1823 = vmatpush1.msra.mxu0 0.0
    %1824 = vmatprep.subr.mxu0 0.0
    %1825 = vmatpush1.msra.mxu0 0.0
    %1826 = vmatprep.subr.mxu0 0.0
    %1827 = vmatpush1.msra.mxu0 0.0
    %1828 = vmatprep.subr.mxu0 0.0
    %1829 = vmatpush1.msra.mxu0 0.0
    %1830 = vmatprep.subr.mxu0 0.0
    %1831 = vmatpush1.msra.mxu0 0.0
    %1832 = vmatprep.subr.mxu0 0.0
    %1833 = vmatpush1.msra.mxu0 0.0
    %1834 = vmatprep.subr.mxu0 0.0
    %1835 = vmatpush1.msra.mxu0 0.0
    %1836 = vmatprep.subr.mxu0 0.0
    %1837 = vmatpush1.msra.mxu0 0.0
    %1838 = vmatprep.subr.mxu0 0.0
    %1839 = vmatpush1.msra.mxu0 0.0
    %1840 = vmatprep.subr.mxu0 0.0
    %1841 = vmatpush1.msra.mxu0 0.0
    %1842 = vmatprep.subr.mxu0 0.0
    %1843 = vmatpush1.msra.mxu0 0.0
    %1844 = vmatprep.subr.mxu0 0.0
    %1845 = vmatpush1.msra.mxu0 0.0
    %1846 = vmatprep.subr.mxu0 0.0
    %1847 = vmatpush1.msra.mxu0 0.0
    %1848 = vmatprep.subr.mxu0 0.0
    %1849 = vmatpush1.msra.mxu0 0.0
    %1850 = vmatprep.subr.mxu0 0.0
    %1851 = vmatpush1.msra.mxu0 0.0
    %1852 = vmatprep.subr.mxu0 0.0
    %1853 = vmatpush1.msra.mxu0 0.0
    %1854 = vmatprep.subr.mxu0 0.0
    %1855 = vmatpush1.msra.mxu0 0.0
    %1856 = vmatprep.subr.mxu0 0.0
    %1857 = vmatpush1.msra.mxu0 0.0
    %1858 = vmatprep.subr.mxu0 0.0
    %1859 = vmatpush1.msra.mxu0 0.0
    %1860 = vmatprep.subr.mxu0 0.0
    %1861 = vmatpush1.msra.mxu0 0.0
    %1862 = vmatprep.subr.mxu0 0.0
    %1863 = vmatpush1.msra.mxu0 0.0
    %1864 = vmatprep.mubr.f32.mxu0 0.0
    %1865 = vmatmul.mubr.f32.gmra.mrb[0].mxu0 %v1798
    %v1866 = vpop.f32.mrb[0].mxu0
    %v1867 = vadd.f32 %v1795, %v1866
    %v1868 = vpop.f32.mrb[0].mxu0
    %1869 = vdwg.mxu0
    %vm1870 = vcmask 25600
    %1871 = vst.msk [vmem:[#allocation10] sm:$0x3] %vm1870, %v1867
    // Predicated region
    $region54: #{tpu_custom_call.1} parent=1 // pred_check
      _
    $region55: #{tpu_custom_call.1} parent=1 // pred_check_branch
      %1873 = sbr.rel (0) target = $region57
    $region56: #{tpu_custom_call.1} parent=1 // pred_region
      %s1875 = ssub.s32 32, 32
      %1876 = vsyncadd [#allocation4], %s1875
      %s1878 = sshll.u32 [#allocation10], 4
      %s1879 = int_to_ptr.vmem [resolvable:$true] %s1878
      %1881 = dma.vmem_to_hbm [thread:$0]  %s1879, 32, %s9, [#allocation4]
    $region57: #{tpu_custom_call.1} parent=1 // pred_fallthru
      _
    // Predicated region
    $region58: #{tpu_custom_call.1} parent=1 // pred_check
      _
    $region59: #{tpu_custom_call.1} parent=1 // pred_check_branch
      %1883 = sbr.rel (0) target = $region61
    $region60: #{tpu_custom_call.1} parent=1 // pred_region
      %1884 = dma.done [#allocation4], 32
    $region61: #{tpu_custom_call.1} parent=1 // pred_fallthru
      _
    %1885 = vsyncpa [#allocation3], 1
    %1886 = vsyncpa [#allocation6], 1
    %1887 = vsyncpa [#allocation9], 1
    %1888 = vsyncpa [#allocation4], 1

</llo_original>
